<compile_context>
chip_gen: v7x
topology: tpu7x:2x2x1
jax: 0.10.0
libtpu: 0.0.40
codegen_flags: <defaults>
</compile_context>

<pallas_src>
import functools
import math

import jax
import jax.numpy as jnp
from jax.experimental import pallas as pl
from jax.experimental.pallas import tpu as pltpu

LN_EPS = 1e-12     # espnet LayerNorm eps
NEG_INF = -1e30


# ----------------------------- kernel ---------------------------------------

def _layer_norm(x, scale, bias):
    mu = jnp.mean(x, axis=-1, keepdims=True)
    var = jnp.mean(jnp.square(x - mu), axis=-1, keepdims=True)
    return (x - mu) * jax.lax.rsqrt(var + LN_EPS) * scale + bias


def transformer_stack_kernel(
        x_ref, pe_ref, mask_ref,
        wqkv_ref, wo_ref, w1_ref, w2_ref, vec_ref, after_ref,
        o_ref, acc_ref, *, num_heads):
    """All encoder layers + final LayerNorm for one block of batch elements.

    grid = (B // Bt, L): batch-block axis is 'parallel' (megacore), layer axis
    'arbitrary'.  The (Bt, T, D) residual stream lives in the f32 VMEM scratch
    `acc_ref` across the whole layer loop; layer l+1 weights are DMA'd while
    layer l computes.
    """
    l = pl.program_id(1)
    bf16 = jnp.bfloat16

    Bt, T, D = acc_ref.shape
    H = num_heads
    dk = D // H
    F = w1_ref.shape[-1]

    @pl.when(l == 0)
    def _init():
        # ScaledPositionalEncoding: x + alpha * pe (alpha folded into pe).
        acc_ref[...] = x_ref[...] + pe_ref[...][None]

    x = acc_ref[...].reshape(Bt * T, D)            # f32 residual stream

    vec = vec_ref[0]                               # (8, C) packed per-layer vectors
    ln1_s, ln1_b = vec[0:1, :D], vec[1:2, :D]
    bqkv = vec[2:3, :3 * D]
    bo = vec[3:4, :D]
    ln2_s, ln2_b = vec[4:5, :D], vec[5:6, :D]
    b1 = vec[6:7, :F]
    b2 = vec[7:8, :D]

    # Additive key mask, hoisted once per layer (0 = valid, -1e30 = padded).
    mask_bias = jnp.where(mask_ref[...] > 0.0, 0.0, NEG_INF)   # (Bt, 1, T)

    # --------------- self-attention sub-layer (normalize_before=True) -------
    xn = _layer_norm(x, ln1_s, ln1_b).astype(bf16)             # (Bt*T, D)
    # Single wide QKV projection; columns are [Q_all | K_all | V_all] and the
    # 1/sqrt(dk) scale is pre-folded into the Q columns / bias.
    qkv = (jnp.dot(xn, wqkv_ref[0], preferred_element_type=jnp.float32)
           + bqkv).astype(bf16)                                # (Bt*T, 3D)

    ctx_heads = []
    for h in range(H):                     # static unroll: per-head attention
        q_h = qkv[:, h * dk:(h + 1) * dk].reshape(Bt, T, dk)
        k_h = qkv[:, D + h * dk:D + (h + 1) * dk].reshape(Bt, T, dk)
        v_h = qkv[:, 2 * D + h * dk:2 * D + (h + 1) * dk].reshape(Bt, T, dk)
        s = jnp.einsum("btc,bsc->bts", q_h, k_h,
                       preferred_element_type=jnp.float32)     # (Bt, T, T)
        s = s + mask_bias
        s = s - jnp.max(s, axis=-1, keepdims=True)
        e = jnp.exp(s)
        p = e * pl.reciprocal(jnp.sum(e, axis=-1, keepdims=True), approx=True)
        # NOTE: espnet's post-softmax masked_fill is redundant here (exp of
        # masked scores is exactly 0); only fully-padded query rows would
        # differ and those are discarded downstream.
        ctx_heads.append(jnp.einsum("bts,bsc->btc", p.astype(bf16), v_h,
                                    preferred_element_type=jnp.float32))
    ctx = jnp.concatenate(ctx_heads, axis=-1).reshape(Bt * T, D)   # head concat
    att = jnp.dot(ctx.astype(bf16), wo_ref[0],
                  preferred_element_type=jnp.float32)              # (Bt*T, D)
    x = x + att + bo               # dropout == identity (eval)

    # --------------- position-wise feed-forward sub-layer -------------------
    xn2 = _layer_norm(x, ln2_s, ln2_b).astype(bf16)
    h1 = jnp.maximum(
        jnp.dot(xn2, w1_ref[0], preferred_element_type=jnp.float32) + b1, 0.0)
    ff = jnp.dot(h1.astype(bf16), w2_ref[0],
                 preferred_element_type=jnp.float32) + b2
    acc_ref[...] = (x + ff).reshape(Bt, T, D)

    @pl.when(l == pl.num_programs(1) - 1)
    def _final():
        # after_norm epilogue: single HBM writeback of the (Bt, T, D) block.
        out = _layer_norm(acc_ref[...].reshape(Bt * T, D),
                          after_ref[0:1], after_ref[1:2])
        o_ref[...] = out.reshape(Bt, T, D)


# ----------------------------- packing / wrapper -----------------------------

def sinusoidal_pe(T, D):
    pos = jnp.arange(T, dtype=jnp.float32)[:, None]
    div = jnp.exp(jnp.arange(0, D, 2, dtype=jnp.float32) * -(math.log(10000.0) / D))
    pe = jnp.zeros((T, D), jnp.float32)
    pe = pe.at[:, 0::2].set(jnp.sin(pos * div))
    pe = pe.at[:, 1::2].set(jnp.cos(pos * div))
    return pe


def _pad_row(v, width):
    return jnp.pad(v, (0, width - v.shape[0]))


def pack_params(params, *, num_heads, alpha, seq_len):
    """Fuse/reorder weights offline.

    NOTE: 1/sqrt(dk) is baked into the Q columns of wqkv/bqkv and alpha into
    the positional encoding, so the packed params are specific to this
    (num_heads, alpha) configuration.
    """
    layers = params["layers"]
    D = layers[0]["wq"].shape[0]
    F = layers[0]["w1"].shape[1]
    dk = D // num_heads
    scale = 1.0 / math.sqrt(dk)
    bf = jnp.bfloat16
    C = max(3 * D, F)

    wqkv, wo, w1, w2, vec = [], [], [], [], []
    for p in layers:
        wqkv.append(jnp.concatenate([p["wq"] * scale, p["wk"], p["wv"]], axis=1))
        wo.append(p["wo"])
        w1.append(p["w1"])
        w2.append(p["w2"])
        bqkv = jnp.concatenate([p["bq"][0] * scale, p["bk"][0], p["bv"][0]], axis=0)
        vec.append(jnp.stack([
            _pad_row(p["ln1_s"][0], C), _pad_row(p["ln1_b"][0], C),
            _pad_row(bqkv, C),          _pad_row(p["bo"][0], C),
            _pad_row(p["ln2_s"][0], C), _pad_row(p["ln2_b"][0], C),
            _pad_row(p["b1"][0], C),    _pad_row(p["b2"][0], C)], axis=0))

    st = lambda xs: jnp.stack(xs, axis=0)
    return dict(
        pe=(alpha * sinusoidal_pe(seq_len, D)).astype(jnp.float32),
        wqkv=st(wqkv).astype(bf),     # (L, D, 3D)
        wo=st(wo).astype(bf),         # (L, D, D)
        w1=st(w1).astype(bf),         # (L, D, F)
        w2=st(w2).astype(bf),         # (L, F, D)
        vec=st(vec).astype(jnp.float32),   # (L, 8, C)
        after=jnp.concatenate([params["after_s"], params["after_b"]], axis=0),
    )


def transformer_forward(x, padding_mask, params, *, num_heads, alpha,
                        batch_block=None):
    """Equivalent of Transformer.forward(x, padding_mask) in eval mode."""
    B, T, D = x.shape
    pk = pack_params(params, num_heads=num_heads, alpha=alpha, seq_len=T)
    L = pk["wqkv"].shape[0]
    F = pk["w1"].shape[2]
    C = pk["vec"].shape[2]
    Bt = B if batch_block is None else batch_block   # batch items per grid step
    assert B % Bt == 0, "batch must be divisible by batch_block"

    # mask = ~padding_mask.unsqueeze(1): 1.0 = valid key position
    mask_f = (~padding_mask)[:, None, :].astype(jnp.float32)   # (B, 1, T)

    def per_block(shape):     # batch-blocked arrays
        return pl.BlockSpec((Bt,) + tuple(shape[1:]),
                            lambda b, l: (b,) + (0,) * (len(shape) - 1))

    def per_layer(shape):     # layer-streamed weights (index only depends on l)
        return pl.BlockSpec((1,) + tuple(shape[1:]),
                            lambda b, l: (l,) + (0,) * (len(shape) - 1))

    def shared(shape):
        return pl.BlockSpec(tuple(shape), lambda b, l: (0,) * len(shape))

    in_specs = [
        per_block((B, T, D)),        # x
        shared((T, D)),              # alpha * positional encoding
        per_block((B, 1, T)),        # key validity mask
        per_layer((L, D, 3 * D)),    # fused [Q|K|V] projection weight (bf16)
        per_layer((L, D, D)),        # output projection weight (bf16)
        per_layer((L, D, F)),        # FFN w1 (bf16)
        per_layer((L, F, D)),        # FFN w2 (bf16)
        per_layer((L, 8, C)),        # packed per-layer LN scales/biases + biases
        shared((2, D)),              # after_norm scale / bias
    ]

    kernel = functools.partial(transformer_stack_kernel, num_heads=num_heads)
    # TODO(synk): for long sequences (T >~ 1k) add flash-style KV-block tiling
    # (and/or head chunking); this design keeps the (Bt, T, D) stream and the
    # per-head (Bt, T, T) score tiles resident in VMEM.
    return pl.pallas_call(
        kernel,
        out_shape=jax.ShapeDtypeStruct((B, T, D), jnp.float32),
        grid_spec=pltpu.PrefetchScalarGridSpec(
            num_scalar_prefetch=0,
            grid=(B // Bt, L),            # layer axis innermost
            in_specs=in_specs,
            out_specs=per_block((B, T, D)),
            scratch_shapes=[pltpu.VMEM((Bt, T, D), jnp.float32)]),
        compiler_params=pltpu.CompilerParams(
            dimension_semantics=("parallel", "arbitrary"),
            # 48 MiB fits every generation (v7x: 64 MiB/TC physical) with
            # headroom; raise on v6e for larger T / batch blocks.
            vmem_limit_bytes=48 * 1024 * 1024),
    )(x, pk["pe"], mask_f, pk["wqkv"], pk["wo"], pk["w1"], pk["w2"],
      pk["vec"], pk["after"])


# ---------------------- pure-JAX reference (for checking) -------------------

def reference_forward(x, padding_mask, params, *, num_heads, alpha):
    B, T, D = x.shape
    dk = D // num_heads
    valid = (~padding_mask)[:, None, None, :]   # (B,1,1,T) over keys
    x = x + alpha * sinusoidal_pe(T, D)[None]

    def ln(v, s, b):
        mu = jnp.mean(v, -1, keepdims=True)
        var = jnp.mean(jnp.square(v - mu), -1, keepdims=True)
        return (v - mu) * jax.lax.rsqrt(var + LN_EPS) * s + b

    for p in params["layers"]:
        xn = ln(x, p["ln1_s"][0], p["ln1_b"][0])
        q = (xn @ p["wq"] + p["bq"][0]).reshape(B, T, num_heads, dk)
        k = (xn @ p["wk"] + p["bk"][0]).reshape(B, T, num_heads, dk)
        v = (xn @ p["wv"] + p["bv"][0]).reshape(B, T, num_heads, dk)
        scores = jnp.einsum("bthd,bshd->bhts", q, k) / math.sqrt(dk)
        scores = jnp.where(valid, scores, -1e30)
        attn = jax.nn.softmax(scores, axis=-1)
        attn = jnp.where(valid, attn, 0.0)
        ctx = jnp.einsum("bhts,bshd->bthd", attn, v).reshape(B, T, D)
        x = x + ctx @ p["wo"] + p["bo"][0]
        xn2 = ln(x, p["ln2_s"][0], p["ln2_b"][0])
        x = x + jnp.maximum(xn2 @ p["w1"] + p["b1"][0], 0.0) @ p["w2"] + p["b2"][0]
    return ln(x, params["after_s"][0], params["after_b"][0])


# ----------------------------- param init -----------------------------------

def init_params(key, dim, ffn_dim, num_layers):
    layers = []
    for _ in range(num_layers):
        keys = jax.random.split(key, 7)
        key = keys[0]
        s = 0.05
        layers.append(dict(
            ln1_s=jnp.ones((1, dim), jnp.float32), ln1_b=jnp.zeros((1, dim), jnp.float32),
            wq=s * jax.random.normal(keys[1], (dim, dim), jnp.float32), bq=jnp.zeros((1, dim), jnp.float32),
            wk=s * jax.random.normal(keys[2], (dim, dim), jnp.float32), bk=jnp.zeros((1, dim), jnp.float32),
            wv=s * jax.random.normal(keys[3], (dim, dim), jnp.float32), bv=jnp.zeros((1, dim), jnp.float32),
            wo=s * jax.random.normal(keys[4], (dim, dim), jnp.float32), bo=jnp.zeros((1, dim), jnp.float32),
            ln2_s=jnp.ones((1, dim), jnp.float32), ln2_b=jnp.zeros((1, dim), jnp.float32),
            w1=s * jax.random.normal(keys[5], (dim, ffn_dim), jnp.float32), b1=jnp.zeros((1, ffn_dim), jnp.float32),
            w2=s * jax.random.normal(keys[6], (ffn_dim, dim), jnp.float32), b2=jnp.zeros((1, dim), jnp.float32),
        ))
    return dict(layers=layers,
                after_s=jnp.ones((1, dim), jnp.float32),
                after_b=jnp.zeros((1, dim), jnp.float32))


# ------------------------------- main ---------------------------------------

if __name__ == "__main__":
    B, T, D = 2, 8, 32
    NUM_HEADS, FFN, LAYERS = 2, 64, 2
    INIT_ALPHA = 1.0

    key = jax.random.PRNGKey(0)
    kx, kp = jax.random.split(key)
    x = jax.random.normal(kx, (B, T, D), jnp.float32)
    # padding_mask: True = padded.  Pad the last two frames of batch item 1.
    padding_mask = jnp.zeros((B, T), bool).at[1, T - 2:].set(True)
    params = init_params(kp, D, FFN, LAYERS)

    out = transformer_forward(x, padding_mask, params,
                              num_heads=NUM_HEADS, alpha=INIT_ALPHA)
    out = jax.block_until_ready(out)

    ref = reference_forward(x, padding_mask, params,
                            num_heads=NUM_HEADS, alpha=INIT_ALPHA)
    assert out.shape == (B, T, D)
    # Kernel uses bf16 MXU operands (+ approx reciprocal) vs the f32 reference,
    # so tolerance is loosened accordingly.
    assert jnp.allclose(out, ref, atol=5e-2, rtol=5e-2), "mismatch vs JAX reference"
    # TODO(synk): dropout in pos-enc / sub-layers is omitted (eval-mode identity).
    print("KERNEL_OK")
</pallas_src>

<mosaic_0001>
module attributes {stable_mosaic.version = 11 : i64} {
  func.func @transformer_stack_kernel(%arg0: i32, %arg1: i32, %arg2: memref<2x8x32xf32, #tpu.memory_space<vmem>>, %arg3: memref<8x32xf32, #tpu.memory_space<vmem>>, %arg4: memref<2x1x8xf32, #tpu.memory_space<vmem>>, %arg5: memref<1x32x96xbf16, #tpu.memory_space<vmem>>, %arg6: memref<1x32x32xbf16, #tpu.memory_space<vmem>>, %arg7: memref<1x32x64xbf16, #tpu.memory_space<vmem>>, %arg8: memref<1x64x32xbf16, #tpu.memory_space<vmem>>, %arg9: memref<1x8x96xf32, #tpu.memory_space<vmem>>, %arg10: memref<2x32xf32, #tpu.memory_space<vmem>>, %arg11: memref<2x8x32xf32, #tpu.memory_space<vmem>>, %arg12: memref<2x8x32xf32, #tpu.memory_space<vmem>>) attributes {dimension_semantics = [#tpu.dimension_semantics<parallel>, #tpu.dimension_semantics<arbitrary>], iteration_bounds = array<i64: 1, 2>, scalar_prefetch = 0 : i64, scratch_operands = 1 : i64, tpu.core_type = #tpu.core_type<tc>, window_params = [{transform_indices = @transform_0, window_bounds = array<i64: 2, 8, 32>}, {pipeline_mode = #tpu.pipeline_mode<synchronous>, transform_indices = @transform_1, window_bounds = array<i64: 8, 32>}, {transform_indices = @transform_2, window_bounds = array<i64: 2, 1, 8>}, {transform_indices = @transform_3, window_bounds = array<i64: 1, 32, 96>}, {transform_indices = @transform_4, window_bounds = array<i64: 1, 32, 32>}, {transform_indices = @transform_5, window_bounds = array<i64: 1, 32, 64>}, {transform_indices = @transform_6, window_bounds = array<i64: 1, 64, 32>}, {transform_indices = @transform_7, window_bounds = array<i64: 1, 8, 96>}, {pipeline_mode = #tpu.pipeline_mode<synchronous>, transform_indices = @transform_8, window_bounds = array<i64: 2, 32>}, {transform_indices = @transform_9, window_bounds = array<i64: 2, 8, 32>}]} {
    %c0_i32 = arith.constant 0 : i32
    %0 = arith.cmpi eq, %arg1, %c0_i32 : i32
    %1 = arith.extui %0 : i1 to i32
    %c0_i32_0 = arith.constant 0 : i32
    %2 = arith.cmpi ne, %1, %c0_i32_0 : i32
    scf.if %2 {
      %c0_50 = arith.constant 0 : index
      %c0_51 = arith.constant 0 : index
      %c0_52 = arith.constant 0 : index
      %143 = vector.load %arg2[%c0_50, %c0_51, %c0_52] : memref<2x8x32xf32, #tpu.memory_space<vmem>>, vector<2x8x32xf32>
      %c0_53 = arith.constant 0 : index
      %c0_54 = arith.constant 0 : index
      %144 = vector.load %arg3[%c0_53, %c0_54] : memref<8x32xf32, #tpu.memory_space<vmem>>, vector<8x32xf32>
      %145 = vector.shape_cast %144 : vector<8x32xf32> to vector<1x8x32xf32>
      %146 = vector.broadcast %145 : vector<1x8x32xf32> to vector<2x8x32xf32>
      %147 = arith.addf %143, %146 : vector<2x8x32xf32>
      %c0_55 = arith.constant 0 : index
      %c0_56 = arith.constant 0 : index
      %c0_57 = arith.constant 0 : index
      %148 = vector.load %arg12[%c0_55, %c0_56, %c0_57] : memref<2x8x32xf32, #tpu.memory_space<vmem>>, vector<2x8x32xf32>
      tpu.vector_store %arg12[%c0_55, %c0_56, %c0_57], %147 {strides = array<i32>} : memref<2x8x32xf32, #tpu.memory_space<vmem>>, vector<2x8x32xf32>,
    } else {
    }
    %c0 = arith.constant 0 : index
    %c0_1 = arith.constant 0 : index
    %c0_2 = arith.constant 0 : index
    %3 = vector.load %arg12[%c0, %c0_1, %c0_2] : memref<2x8x32xf32, #tpu.memory_space<vmem>>, vector<2x8x32xf32>
    %4 = vector.shape_cast %3 : vector<2x8x32xf32> to vector<16x32xf32>
    %c0_3 = arith.constant 0 : index
    %c0_4 = arith.constant 0 : index
    %c0_5 = arith.constant 0 : index
    %5 = vector.load %arg9[%c0_3, %c0_4, %c0_5] : memref<1x8x96xf32, #tpu.memory_space<vmem>>, vector<1x8x96xf32>
    %6 = vector.shape_cast %5 : vector<1x8x96xf32> to vector<8x96xf32>
    %7 = vector.extract_strided_slice %6 {offsets = [0, 0], sizes = [1, 32], strides = [1, 1]} : vector<8x96xf32> to vector<1x32xf32>
    %8 = vector.extract_strided_slice %6 {offsets = [1, 0], sizes = [1, 32], strides = [1, 1]} : vector<8x96xf32> to vector<1x32xf32>
    %9 = vector.extract_strided_slice %6 {offsets = [2, 0], sizes = [1, 96], strides = [1, 1]} : vector<8x96xf32> to vector<1x96xf32>
    %10 = vector.extract_strided_slice %6 {offsets = [3, 0], sizes = [1, 32], strides = [1, 1]} : vector<8x96xf32> to vector<1x32xf32>
    %11 = vector.extract_strided_slice %6 {offsets = [4, 0], sizes = [1, 32], strides = [1, 1]} : vector<8x96xf32> to vector<1x32xf32>
    %12 = vector.extract_strided_slice %6 {offsets = [5, 0], sizes = [1, 32], strides = [1, 1]} : vector<8x96xf32> to vector<1x32xf32>
    %13 = vector.extract_strided_slice %6 {offsets = [6, 0], sizes = [1, 64], strides = [1, 1]} : vector<8x96xf32> to vector<1x64xf32>
    %14 = vector.extract_strided_slice %6 {offsets = [7, 0], sizes = [1, 32], strides = [1, 1]} : vector<8x96xf32> to vector<1x32xf32>
    %c0_6 = arith.constant 0 : index
    %c0_7 = arith.constant 0 : index
    %c0_8 = arith.constant 0 : index
    %15 = vector.load %arg4[%c0_6, %c0_7, %c0_8] : memref<2x1x8xf32, #tpu.memory_space<vmem>>, vector<2x1x8xf32>
    %cst = arith.constant 0.000000e+00 : f32
    %16 = vector.broadcast %cst : f32 to vector<2x1x8xf32>
    %17 = arith.cmpf ogt, %15, %16 : vector<2x1x8xf32>
    %cst_9 = arith.constant 0.000000e+00 : f32
    %cst_10 = arith.constant -1.000000e+30 : f32
    %18 = vector.broadcast %cst_9 : f32 to vector<2x1x8xf32>
    %19 = vector.broadcast %cst_10 : f32 to vector<2x1x8xf32>
    %20 = arith.select %17, %18, %19 : vector<2x1x8xi1>, vector<2x1x8xf32>
    %cst_11 = arith.constant dense<0.000000e+00> : vector<16xf32>
    %21 = vector.multi_reduction <add>, %4, %cst_11 [1] : vector<16x32xf32> to vector<16xf32>
    %22 = vector.shape_cast %21 : vector<16xf32> to vector<16x1xf32>
    %cst_12 = arith.constant 3.200000e+01 : f32
    %23 = vector.broadcast %cst_12 : f32 to vector<16x1xf32>
    %24 = arith.divf %22, %23 : vector<16x1xf32>
    %25 = vector.broadcast %24 : vector<16x1xf32> to vector<16x32xf32>
    %26 = arith.subf %4, %25 : vector<16x32xf32>
    %27 = arith.mulf %26, %26 : vector<16x32xf32>
    %cst_13 = arith.constant dense<0.000000e+00> : vector<16xf32>
    %28 = vector.multi_reduction <add>, %27, %cst_13 [1] : vector<16x32xf32> to vector<16xf32>
    %29 = vector.shape_cast %28 : vector<16xf32> to vector<16x1xf32>
    %cst_14 = arith.constant 3.200000e+01 : f32
    %30 = vector.broadcast %cst_14 : f32 to vector<16x1xf32>
    %31 = arith.divf %29, %30 : vector<16x1xf32>
    %32 = vector.broadcast %24 : vector<16x1xf32> to vector<16x32xf32>
    %33 = arith.subf %4, %32 : vector<16x32xf32>
    %cst_15 = arith.constant 9.99999996E-13 : f32
    %34 = vector.broadcast %cst_15 : f32 to vector<16x1xf32>
    %35 = arith.addf %31, %34 : vector<16x1xf32>
    %36 = math.rsqrt %35 : vector<16x1xf32>
    %37 = vector.broadcast %36 : vector<16x1xf32> to vector<16x32xf32>
    %38 = arith.mulf %33, %37 : vector<16x32xf32>
    %39 = vector.broadcast %7 : vector<1x32xf32> to vector<16x32xf32>
    %40 = arith.mulf %38, %39 : vector<16x32xf32>
    %41 = vector.broadcast %8 : vector<1x32xf32> to vector<16x32xf32>
    %42 = arith.addf %40, %41 : vector<16x32xf32>
    %43 = arith.truncf %42 : vector<16x32xf32> to vector<16x32xbf16>
    %c0_16 = arith.constant 0 : index
    %c0_17 = arith.constant 0 : index
    %c0_18 = arith.constant 0 : index
    %44 = vector.load %arg5[%c0_16, %c0_17, %c0_18] : memref<1x32x96xbf16, #tpu.memory_space<vmem>>, vector<1x32x96xbf16>
    %45 = vector.shape_cast %44 : vector<1x32x96xbf16> to vector<32x96xbf16>
    %cst_19 = arith.constant dense<0.000000e+00> : vector<16x96xf32>
    %46 = tpu.matmul %43, %45, %cst_19 {dimension_numbers = #tpu.dot_dimension_numbers<[1], [0], [0], [1], [0, 0, 1, 1], [], []>} : vector<16x32xbf16>, vector<32x96xbf16>, vector<16x96xf32> -> vector<16x96xf32>
    %47 = vector.broadcast %9 : vector<1x96xf32> to vector<16x96xf32>
    %48 = arith.addf %46, %47 : vector<16x96xf32>
    %49 = arith.truncf %48 : vector<16x96xf32> to vector<16x96xbf16>
    %50 = vector.extract_strided_slice %49 {offsets = [0, 0], sizes = [16, 16], strides = [1, 1]} : vector<16x96xbf16> to vector<16x16xbf16>
    %51 = vector.shape_cast %50 : vector<16x16xbf16> to vector<2x8x16xbf16>
    %52 = vector.extract_strided_slice %49 {offsets = [0, 32], sizes = [16, 16], strides = [1, 1]} : vector<16x96xbf16> to vector<16x16xbf16>
    %53 = vector.shape_cast %52 : vector<16x16xbf16> to vector<2x8x16xbf16>
    %54 = vector.extract_strided_slice %49 {offsets = [0, 64], sizes = [16, 16], strides = [1, 1]} : vector<16x96xbf16> to vector<16x16xbf16>
    %55 = vector.shape_cast %54 : vector<16x16xbf16> to vector<2x8x16xbf16>
    "tpu.trace_start"() <{level = 10 : i32, message = "btc,bsc->bts"}> : () -> ()
    %cst_20 = arith.constant dense<0.000000e+00> : vector<2x8x8xf32>
    %56 = tpu.matmul %51, %53, %cst_20 {dimension_numbers = #tpu.dot_dimension_numbers<[2], [2], [1], [1], [0, 0, 0, 1, 1, 1], [0], [0]>} : vector<2x8x16xbf16>, vector<2x8x16xbf16>, vector<2x8x8xf32> -> vector<2x8x8xf32>
    "tpu.trace_stop"() : () -> ()
    %57 = vector.broadcast %20 : vector<2x1x8xf32> to vector<2x8x8xf32>
    %58 = arith.addf %56, %57 : vector<2x8x8xf32>
    %cst_21 = arith.constant dense<0xFF800000> : vector<2x8xf32>
    %59 = vector.multi_reduction <maximumf>, %58, %cst_21 [2] : vector<2x8x8xf32> to vector<2x8xf32>
    %60 = vector.shape_cast %59 : vector<2x8xf32> to vector<2x8x1xf32>
    %61 = vector.broadcast %60 : vector<2x8x1xf32> to vector<2x8x8xf32>
    %62 = arith.subf %58, %61 : vector<2x8x8xf32>
    %63 = math.exp %62 : vector<2x8x8xf32>
    %cst_22 = arith.constant dense<0.000000e+00> : vector<2x8xf32>
    %64 = vector.multi_reduction <add>, %63, %cst_22 [2] : vector<2x8x8xf32> to vector<2x8xf32>
    %65 = vector.shape_cast %64 : vector<2x8xf32> to vector<2x8x1xf32>
    %66 = tpu.reciprocal %65 {approx = true} : vector<2x8x1xf32> -> vector<2x8x1xf32>
    %67 = vector.broadcast %66 : vector<2x8x1xf32> to vector<2x8x8xf32>
    %68 = arith.mulf %63, %67 : vector<2x8x8xf32>
    %69 = arith.truncf %68 : vector<2x8x8xf32> to vector<2x8x8xbf16>
    "tpu.trace_start"() <{level = 10 : i32, message = "bts,bsc->btc"}> : () -> ()
    %cst_23 = arith.constant dense<0.000000e+00> : vector<2x8x16xf32>
    %70 = tpu.matmul %69, %55, %cst_23 {dimension_numbers = #tpu.dot_dimension_numbers<[2], [1], [1], [2], [0, 0, 0, 1, 1, 2], [0], [0]>} : vector<2x8x8xbf16>, vector<2x8x16xbf16>, vector<2x8x16xf32> -> vector<2x8x16xf32>
    "tpu.trace_stop"() : () -> ()
    %71 = vector.extract_strided_slice %49 {offsets = [0, 16], sizes = [16, 16], strides = [1, 1]} : vector<16x96xbf16> to vector<16x16xbf16>
    %72 = vector.shape_cast %71 : vector<16x16xbf16> to vector<2x8x16xbf16>
    %73 = vector.extract_strided_slice %49 {offsets = [0, 48], sizes = [16, 16], strides = [1, 1]} : vector<16x96xbf16> to vector<16x16xbf16>
    %74 = vector.shape_cast %73 : vector<16x16xbf16> to vector<2x8x16xbf16>
    %75 = vector.extract_strided_slice %49 {offsets = [0, 80], sizes = [16, 16], strides = [1, 1]} : vector<16x96xbf16> to vector<16x16xbf16>
    %76 = vector.shape_cast %75 : vector<16x16xbf16> to vector<2x8x16xbf16>
    "tpu.trace_start"() <{level = 10 : i32, message = "btc,bsc->bts"}> : () -> ()
    %cst_24 = arith.constant dense<0.000000e+00> : vector<2x8x8xf32>
    %77 = tpu.matmul %72, %74, %cst_24 {dimension_numbers = #tpu.dot_dimension_numbers<[2], [2], [1], [1], [0, 0, 0, 1, 1, 1], [0], [0]>} : vector<2x8x16xbf16>, vector<2x8x16xbf16>, vector<2x8x8xf32> -> vector<2x8x8xf32>
    "tpu.trace_stop"() : () -> ()
    %78 = vector.broadcast %20 : vector<2x1x8xf32> to vector<2x8x8xf32>
    %79 = arith.addf %77, %78 : vector<2x8x8xf32>
    %cst_25 = arith.constant dense<0xFF800000> : vector<2x8xf32>
    %80 = vector.multi_reduction <maximumf>, %79, %cst_25 [2] : vector<2x8x8xf32> to vector<2x8xf32>
    %81 = vector.shape_cast %80 : vector<2x8xf32> to vector<2x8x1xf32>
    %82 = vector.broadcast %81 : vector<2x8x1xf32> to vector<2x8x8xf32>
    %83 = arith.subf %79, %82 : vector<2x8x8xf32>
    %84 = math.exp %83 : vector<2x8x8xf32>
    %cst_26 = arith.constant dense<0.000000e+00> : vector<2x8xf32>
    %85 = vector.multi_reduction <add>, %84, %cst_26 [2] : vector<2x8x8xf32> to vector<2x8xf32>
    %86 = vector.shape_cast %85 : vector<2x8xf32> to vector<2x8x1xf32>
    %87 = tpu.reciprocal %86 {approx = true} : vector<2x8x1xf32> -> vector<2x8x1xf32>
    %88 = vector.broadcast %87 : vector<2x8x1xf32> to vector<2x8x8xf32>
    %89 = arith.mulf %84, %88 : vector<2x8x8xf32>
    %90 = arith.truncf %89 : vector<2x8x8xf32> to vector<2x8x8xbf16>
    "tpu.trace_start"() <{level = 10 : i32, message = "bts,bsc->btc"}> : () -> ()
    %cst_27 = arith.constant dense<0.000000e+00> : vector<2x8x16xf32>
    %91 = tpu.matmul %90, %76, %cst_27 {dimension_numbers = #tpu.dot_dimension_numbers<[2], [1], [1], [2], [0, 0, 0, 1, 1, 2], [0], [0]>} : vector<2x8x8xbf16>, vector<2x8x16xbf16>, vector<2x8x16xf32> -> vector<2x8x16xf32>
    "tpu.trace_stop"() : () -> ()
    %92 = tpu.concatenate %70, %91 in 2 : vector<2x8x16xf32>, vector<2x8x16xf32> -> vector<2x8x32xf32>
    %93 = vector.shape_cast %92 : vector<2x8x32xf32> to vector<16x32xf32>
    %94 = arith.truncf %93 : vector<16x32xf32> to vector<16x32xbf16>
    %c0_28 = arith.constant 0 : index
    %c0_29 = arith.constant 0 : index
    %c0_30 = arith.constant 0 : index
    %95 = vector.load %arg6[%c0_28, %c0_29, %c0_30] : memref<1x32x32xbf16, #tpu.memory_space<vmem>>, vector<1x32x32xbf16>
    %96 = vector.shape_cast %95 : vector<1x32x32xbf16> to vector<32x32xbf16>
    %cst_31 = arith.constant dense<0.000000e+00> : vector<16x32xf32>
    %97 = tpu.matmul %94, %96, %cst_31 {dimension_numbers = #tpu.dot_dimension_numbers<[1], [0], [0], [1], [0, 0, 1, 1], [], []>} : vector<16x32xbf16>, vector<32x32xbf16>, vector<16x32xf32> -> vector<16x32xf32>
    %98 = arith.addf %4, %97 : vector<16x32xf32>
    %99 = vector.broadcast %10 : vector<1x32xf32> to vector<16x32xf32>
    %100 = arith.addf %98, %99 : vector<16x32xf32>
    %cst_32 = arith.constant dense<0.000000e+00> : vector<16xf32>
    %101 = vector.multi_reduction <add>, %100, %cst_32 [1] : vector<16x32xf32> to vector<16xf32>
    %102 = vector.shape_cast %101 : vector<16xf32> to vector<16x1xf32>
    %cst_33 = arith.constant 3.200000e+01 : f32
    %103 = vector.broadcast %cst_33 : f32 to vector<16x1xf32>
    %104 = arith.divf %102, %103 : vector<16x1xf32>
    %105 = vector.broadcast %104 : vector<16x1xf32> to vector<16x32xf32>
    %106 = arith.subf %100, %105 : vector<16x32xf32>
    %107 = arith.mulf %106, %106 : vector<16x32xf32>
    %cst_34 = arith.constant dense<0.000000e+00> : vector<16xf32>
    %108 = vector.multi_reduction <add>, %107, %cst_34 [1] : vector<16x32xf32> to vector<16xf32>
    %109 = vector.shape_cast %108 : vector<16xf32> to vector<16x1xf32>
    %cst_35 = arith.constant 3.200000e+01 : f32
    %110 = vector.broadcast %cst_35 : f32 to vector<16x1xf32>
    %111 = arith.divf %109, %110 : vector<16x1xf32>
    %112 = vector.broadcast %104 : vector<16x1xf32> to vector<16x32xf32>
    %113 = arith.subf %100, %112 : vector<16x32xf32>
    %cst_36 = arith.constant 9.99999996E-13 : f32
    %114 = vector.broadcast %cst_36 : f32 to vector<16x1xf32>
    %115 = arith.addf %111, %114 : vector<16x1xf32>
    %116 = math.rsqrt %115 : vector<16x1xf32>
    %117 = vector.broadcast %116 : vector<16x1xf32> to vector<16x32xf32>
    %118 = arith.mulf %113, %117 : vector<16x32xf32>
    %119 = vector.broadcast %11 : vector<1x32xf32> to vector<16x32xf32>
    %120 = arith.mulf %118, %119 : vector<16x32xf32>
    %121 = vector.broadcast %12 : vector<1x32xf32> to vector<16x32xf32>
    %122 = arith.addf %120, %121 : vector<16x32xf32>
    %123 = arith.truncf %122 : vector<16x32xf32> to vector<16x32xbf16>
    %c0_37 = arith.constant 0 : index
    %c0_38 = arith.constant 0 : index
    %c0_39 = arith.constant 0 : index
    %124 = vector.load %arg7[%c0_37, %c0_38, %c0_39] : memref<1x32x64xbf16, #tpu.memory_space<vmem>>, vector<1x32x64xbf16>
    %125 = vector.shape_cast %124 : vector<1x32x64xbf16> to vector<32x64xbf16>
    %cst_40 = arith.constant dense<0.000000e+00> : vector<16x64xf32>
    %126 = tpu.matmul %123, %125, %cst_40 {dimension_numbers = #tpu.dot_dimension_numbers<[1], [0], [0], [1], [0, 0, 1, 1], [], []>} : vector<16x32xbf16>, vector<32x64xbf16>, vector<16x64xf32> -> vector<16x64xf32>
    %127 = vector.broadcast %13 : vector<1x64xf32> to vector<16x64xf32>
    %128 = arith.addf %126, %127 : vector<16x64xf32>
    %cst_41 = arith.constant 0.000000e+00 : f32
    %129 = vector.broadcast %cst_41 : f32 to vector<16x64xf32>
    %130 = arith.maximumf %128, %129 : vector<16x64xf32>
    %131 = arith.truncf %130 : vector<16x64xf32> to vector<16x64xbf16>
    %c0_42 = arith.constant 0 : index
    %c0_43 = arith.constant 0 : index
    %c0_44 = arith.constant 0 : index
    %132 = vector.load %arg8[%c0_42, %c0_43, %c0_44] : memref<1x64x32xbf16, #tpu.memory_space<vmem>>, vector<1x64x32xbf16>
    %133 = vector.shape_cast %132 : vector<1x64x32xbf16> to vector<64x32xbf16>
    %cst_45 = arith.constant dense<0.000000e+00> : vector<16x32xf32>
    %134 = tpu.matmul %131, %133, %cst_45 {dimension_numbers = #tpu.dot_dimension_numbers<[1], [0], [0], [1], [0, 0, 1, 1], [], []>} : vector<16x64xbf16>, vector<64x32xbf16>, vector<16x32xf32> -> vector<16x32xf32>
    %135 = vector.broadcast %14 : vector<1x32xf32> to vector<16x32xf32>
    %136 = arith.addf %134, %135 : vector<16x32xf32>
    %137 = arith.addf %100, %136 : vector<16x32xf32>
    %138 = vector.shape_cast %137 : vector<16x32xf32> to vector<2x8x32xf32>
    %c0_46 = arith.constant 0 : index
    %c0_47 = arith.constant 0 : index
    %c0_48 = arith.constant 0 : index
    %139 = vector.load %arg12[%c0_46, %c0_47, %c0_48] : memref<2x8x32xf32, #tpu.memory_space<vmem>>, vector<2x8x32xf32>
    tpu.vector_store %arg12[%c0_46, %c0_47, %c0_48], %138 {strides = array<i32>} : memref<2x8x32xf32, #tpu.memory_space<vmem>>, vector<2x8x32xf32>,
    %c1_i32 = arith.constant 1 : i32
    %140 = arith.cmpi eq, %arg1, %c1_i32 : i32
    %141 = arith.extui %140 : i1 to i32
    %c0_i32_49 = arith.constant 0 : i32
    %142 = arith.cmpi ne, %141, %c0_i32_49 : i32
    scf.if %142 {
      %c0_50 = arith.constant 0 : index
      %c0_51 = arith.constant 0 : index
      %c0_52 = arith.constant 0 : index
      %143 = vector.load %arg12[%c0_50, %c0_51, %c0_52] : memref<2x8x32xf32, #tpu.memory_space<vmem>>, vector<2x8x32xf32>
      %144 = vector.shape_cast %143 : vector<2x8x32xf32> to vector<16x32xf32>
      %c0_53 = arith.constant 0 : index
      %c0_54 = arith.constant 0 : index
      %145 = vector.load %arg10[%c0_53, %c0_54] : memref<2x32xf32, #tpu.memory_space<vmem>>, vector<1x32xf32>
      %c1 = arith.constant 1 : index
      %c0_55 = arith.constant 0 : index
      %146 = vector.load %arg10[%c1, %c0_55] : memref<2x32xf32, #tpu.memory_space<vmem>>, vector<1x32xf32>
      %cst_56 = arith.constant dense<0.000000e+00> : vector<16xf32>
      %147 = vector.multi_reduction <add>, %144, %cst_56 [1] : vector<16x32xf32> to vector<16xf32>
      %148 = vector.shape_cast %147 : vector<16xf32> to vector<16x1xf32>
      %cst_57 = arith.constant 3.200000e+01 : f32
      %149 = vector.broadcast %cst_57 : f32 to vector<16x1xf32>
      %150 = arith.divf %148, %149 : vector<16x1xf32>
      %151 = vector.broadcast %150 : vector<16x1xf32> to vector<16x32xf32>
      %152 = arith.subf %144, %151 : vector<16x32xf32>
      %153 = arith.mulf %152, %152 : vector<16x32xf32>
      %cst_58 = arith.constant dense<0.000000e+00> : vector<16xf32>
      %154 = vector.multi_reduction <add>, %153, %cst_58 [1] : vector<16x32xf32> to vector<16xf32>
      %155 = vector.shape_cast %154 : vector<16xf32> to vector<16x1xf32>
      %cst_59 = arith.constant 3.200000e+01 : f32
      %156 = vector.broadcast %cst_59 : f32 to vector<16x1xf32>
      %157 = arith.divf %155, %156 : vector<16x1xf32>
      %158 = vector.broadcast %150 : vector<16x1xf32> to vector<16x32xf32>
      %159 = arith.subf %144, %158 : vector<16x32xf32>
      %cst_60 = arith.constant 9.99999996E-13 : f32
      %160 = vector.broadcast %cst_60 : f32 to vector<16x1xf32>
      %161 = arith.addf %157, %160 : vector<16x1xf32>
      %162 = math.rsqrt %161 : vector<16x1xf32>
      %163 = vector.broadcast %162 : vector<16x1xf32> to vector<16x32xf32>
      %164 = arith.mulf %159, %163 : vector<16x32xf32>
      %165 = vector.broadcast %145 : vector<1x32xf32> to vector<16x32xf32>
      %166 = arith.mulf %164, %165 : vector<16x32xf32>
      %167 = vector.broadcast %146 : vector<1x32xf32> to vector<16x32xf32>
      %168 = arith.addf %166, %167 : vector<16x32xf32>
      %169 = vector.shape_cast %168 : vector<16x32xf32> to vector<2x8x32xf32>
      %c0_61 = arith.constant 0 : index
      %c0_62 = arith.constant 0 : index
      %c0_63 = arith.constant 0 : index
      %170 = vector.load %arg11[%c0_61, %c0_62, %c0_63] : memref<2x8x32xf32, #tpu.memory_space<vmem>>, vector<2x8x32xf32>
      tpu.vector_store %arg11[%c0_61, %c0_62, %c0_63], %169 {strides = array<i32>} : memref<2x8x32xf32, #tpu.memory_space<vmem>>, vector<2x8x32xf32>,
    } else {
    }
    return
  }
  func.func @transform_0(%arg0: i32, %arg1: i32) -> (i32, i32, i32) {
    %c0_i32 = arith.constant 0 : i32
    %c0_i32_0 = arith.constant 0 : i32
    %c0_i32_1 = arith.constant 0 : i32
    return %arg0, %c0_i32, %c0_i32_0 : i32, i32, i32
  }
  func.func @transform_1(%arg0: i32, %arg1: i32) -> (i32, i32) {
    %c0_i32 = arith.constant 0 : i32
    %c0_i32_0 = arith.constant 0 : i32
    %c0_i32_1 = arith.constant 0 : i32
    return %c0_i32, %c0_i32_0 : i32, i32
  }
  func.func @transform_2(%arg0: i32, %arg1: i32) -> (i32, i32, i32) {
    %c0_i32 = arith.constant 0 : i32
    %c0_i32_0 = arith.constant 0 : i32
    %c0_i32_1 = arith.constant 0 : i32
    return %arg0, %c0_i32, %c0_i32_0 : i32, i32, i32
  }
  func.func @transform_3(%arg0: i32, %arg1: i32) -> (i32, i32, i32) {
    %c0_i32 = arith.constant 0 : i32
    %c0_i32_0 = arith.constant 0 : i32
    %c0_i32_1 = arith.constant 0 : i32
    return %arg1, %c0_i32, %c0_i32_0 : i32, i32, i32
  }
  func.func @transform_4(%arg0: i32, %arg1: i32) -> (i32, i32, i32) {
    %c0_i32 = arith.constant 0 : i32
    %c0_i32_0 = arith.constant 0 : i32
    %c0_i32_1 = arith.constant 0 : i32
    return %arg1, %c0_i32, %c0_i32_0 : i32, i32, i32
  }
  func.func @transform_5(%arg0: i32, %arg1: i32) -> (i32, i32, i32) {
    %c0_i32 = arith.constant 0 : i32
    %c0_i32_0 = arith.constant 0 : i32
    %c0_i32_1 = arith.constant 0 : i32
    return %arg1, %c0_i32, %c0_i32_0 : i32, i32, i32
  }
  func.func @transform_6(%arg0: i32, %arg1: i32) -> (i32, i32, i32) {
    %c0_i32 = arith.constant 0 : i32
    %c0_i32_0 = arith.constant 0 : i32
    %c0_i32_1 = arith.constant 0 : i32
    return %arg1, %c0_i32, %c0_i32_0 : i32, i32, i32
  }
  func.func @transform_7(%arg0: i32, %arg1: i32) -> (i32, i32, i32) {
    %c0_i32 = arith.constant 0 : i32
    %c0_i32_0 = arith.constant 0 : i32
    %c0_i32_1 = arith.constant 0 : i32
    return %arg1, %c0_i32, %c0_i32_0 : i32, i32, i32
  }
  func.func @transform_8(%arg0: i32, %arg1: i32) -> (i32, i32) {
    %c0_i32 = arith.constant 0 : i32
    %c0_i32_0 = arith.constant 0 : i32
    %c0_i32_1 = arith.constant 0 : i32
    return %c0_i32, %c0_i32_0 : i32, i32
  }
  func.func @transform_9(%arg0: i32, %arg1: i32) -> (i32, i32, i32) {
    %c0_i32 = arith.constant 0 : i32
    %c0_i32_0 = arith.constant 0 : i32
    %c0_i32_1 = arith.constant 0 : i32
    return %arg0, %c0_i32, %c0_i32_0 : i32, i32, i32
  }
}

</mosaic_0001>

<llo_original>
// kernel: tpu_custom_call.1
$region0: #{tpu_custom_call.1}
  #allocation0 [shape = 'u32[]', space=smem, size = 0x4, offset = 0x4, fixed_abs, tag = 'smem constant byte address 0x4 - core index']
  #allocation1 [shape = 'u32[144,128]{1,0:T(1,128)}', space=vmem, size = 0x12000, scoped, tag = 'internal scratch']
  #allocation2 [shape = 'f32[2,8,32]{2,1,0:T(8,128)}', space=vmem, size = 0x2000, scoped, tag = 'scratch operand']
  %s0 = inlined_call_operand.hbm [shape: f32[2,8,32], index: 0, kind: input, shape index: {}]
  %s1 = inlined_call_operand.hbm [shape: f32[8,32], index: 1, kind: input, shape index: {}]
  %s2 = inlined_call_operand.vmem [shape: f32[2,1,8], index: 2, kind: input, shape index: {}]
  %s3 = inlined_call_operand.vmem [shape: bf16[2,32,96], index: 3, kind: input, shape index: {}]
  %s4 = inlined_call_operand.vmem [shape: bf16[2,32,32], index: 4, kind: input, shape index: {}]
  %s5 = inlined_call_operand.vmem [shape: bf16[2,32,64], index: 5, kind: input, shape index: {}]
  %s6 = inlined_call_operand.vmem [shape: bf16[2,64,32], index: 6, kind: input, shape index: {}]
  %s7 = inlined_call_operand.vmem [shape: f32[2,8,96], index: 7, kind: input, shape index: {}]
  %s8 = inlined_call_operand.vmem [shape: f32[2,32], index: 8, kind: input, shape index: {}]
  %s9 = inlined_call_operand.hbm [shape: f32[2,8,32], index: 9, kind: output, shape index: {}]
  %s10 = sld [smem:[#allocation0]]
  $region85: #{tpu_custom_call.1} parent=0
    _
  %s12 = ssub.s32 1, %s10
  %s13 = scalar_select 0, %s12, %s10
  $region1: #{tpu_custom_call.1} parent=0
    #allocation3 [shape = 'u8[8192]{0}', space=vmem, size = 0x2000, scoped, tag = 'input window, operand 0, single buffered']
    #allocation4 [shape = 's32[2]{0}', space=sflag, size = 0x8, scoped, tag = 'scoped memory for tpu_custom_call.1']
    #allocation5 [shape = 's32[2]{0}', space=sflag, size = 0x8, scoped, tag = 'scoped memory for tpu_custom_call.1']
    #allocation6 [shape = 'u8[4096]{0}', space=vmem, size = 0x1000, scoped, tag = 'input window, operand 1, single buffered']
    #allocation7 [shape = 's32[1]{0}', space=sflag, size = 0x4, scoped, tag = 'scoped memory for tpu_custom_call.1']
    #allocation8 [shape = 'u8[8192]{0}', space=vmem, size = 0x2000, scoped, tag = 'output window, operand 0, single buffered']
    %14 = vsyncpa [#allocation4], 0
    %15 = vsyncpa [#allocation7], 0
    %16 = vsyncpa [#allocation5], 0
    loop: start=0, step=1, limit=4
    $region2: #{tpu_custom_call.1} parent=1 // loop_pre_header
      _
    $region3: #{tpu_custom_call.1} parent=1 // loop_header
      %s18 = sphi 0, %s22
      %p19 = scmp.ge.s32.totalorder %s18, 4
      %s25 = sphi 0, %s37
      %s26 = sphi 0, %s33
      %s27 = sphi 0, %s25
      %s28 = sphi 0, %s26
      %s29 = sphi 0, %s27
      %s30 = sphi 0, %s28
      %s40 = sphi 0, %s42
      %s43 = sphi 0, %s40
      %s44 = sphi 0, %s43
      %s60 = sphi 0, %s44
      %s64 = sphi 0, %s64
      %s66 = sphi 0, %s64
      %s67 = sphi 0, %s66
      %s81 = sphi 0, %s67
      %s87 = sphi 0, %s89
      %s90 = sphi 0, %s87
      %s91 = sphi 0, %s90
      %s107 = sphi 0, %s91
      %s113 = sphi 0, %s115
      %s116 = sphi 0, %s113
      %s117 = sphi 0, %s116
      %s133 = sphi 0, %s117
      %s139 = sphi 0, %s141
      %s142 = sphi 0, %s139
      %s143 = sphi 0, %s142
      %s159 = sphi 0, %s143
      %s165 = sphi 0, %s167
      %s168 = sphi 0, %s165
      %s169 = sphi 0, %s168
      %s185 = sphi 0, %s169
      %s191 = sphi 0, %s193
      %s194 = sphi 0, %s191
      %s195 = sphi 0, %s194
      %s211 = sphi 0, %s195
      %s217 = sphi 0, %s219
      %s220 = sphi 0, %s217
      %s221 = sphi 0, %s220
      %s237 = sphi 0, %s221
      %s241 = sphi 0, %s241
      %s243 = sphi 0, %s241
      %s244 = sphi 0, %s243
      %s258 = sphi 0, %s244
      %s264 = sphi 0, %s266
      %s267 = sphi 0, %s264
      %s268 = sphi 0, %s267
      %s284 = sphi 0, %s268
    $region4: #{tpu_custom_call.1} parent=1 // loop_header_branch
      %21 = sbr.rel (%p19) target = $region8
    $region5: #{tpu_custom_call.1} parent=1 // loop_body
      %s23 = ssub.s32 %s18, 1
      %s24 = ssub.s32 %s18, 2
      %s31 = sadd.s32 1, %s26
      %p32 = scmp.ge.s32.totalorder %s31, 2
      %s33 = scalar_select %p32, 0, %s31
      %s34 = sadd.s32 1, %s25
      %s35 = scalar_select %p32, %s34, %s25
      %p36 = scmp.ge.s32.totalorder %s35, 1
      %s37 = scalar_select %p36, 0, %s35
      %s38 = ssub.s32 %s25, %s37
      %p39 = scmp.eq.s32.totalorder %s38, 0
      %s41 = sadd.s32 %s40, 1
      %s42 = scalar_select %p39, %s40, %s41
      %p45 = pneg %p39
      %p46 = scmp.eq.s32.totalorder %s18, 1
      %p47 = por %p45, %p46
      %p48 = scmp.ne.s32.totalorder %s40, %s43
      %p49 = scmp.eq.s32.totalorder %s18, 0
      %p50 = por %p48, %p49
      %p51 = scmp.ne.s32.totalorder %s40, %s43
      %p52 = scmp.eq.s32.totalorder %s23, 1
      %p53 = por %p51, %p52
      %p54 = scmp.ne.s32.totalorder %s43, %s44
      %p55 = scmp.eq.s32.totalorder %s23, 0
      %p56 = por %p54, %p55
      %p57 = scmp.ne.s32.totalorder %s43, %s44
      %p58 = scmp.eq.s32.totalorder %s24, 1
      %p59 = por %p57, %p58
      %p61 = scmp.ne.s32.totalorder %s44, %s60
      %p62 = scmp.eq.s32.totalorder %s24, 0
      %p63 = por %p61, %p62
      %s65 = sadd.s32 %s64, 1
      %p68 = scmp.eq.s32.totalorder %s18, 1
      %p69 = scmp.ne.s32.totalorder %s64, %s66
      %p70 = scmp.eq.s32.totalorder %s18, 0
      %p71 = por %p69, %p70
      %p72 = scmp.ne.s32.totalorder %s64, %s66
      %p73 = scmp.eq.s32.totalorder %s23, 1
      %p74 = por %p72, %p73
      %p75 = scmp.ne.s32.totalorder %s66, %s67
      %p76 = scmp.eq.s32.totalorder %s23, 0
      %p77 = por %p75, %p76
      %p78 = scmp.ne.s32.totalorder %s66, %s67
      %p79 = scmp.eq.s32.totalorder %s24, 1
      %p80 = por %p78, %p79
      %p82 = scmp.ne.s32.totalorder %s67, %s81
      %p83 = scmp.eq.s32.totalorder %s24, 0
      %p84 = por %p82, %p83
      %s85 = ssub.s32 %s25, %s37
      %p86 = scmp.eq.s32.totalorder %s85, 0
      %s88 = sadd.s32 %s87, 1
      %s89 = scalar_select %p86, %s87, %s88
      %p92 = pneg %p86
      %p93 = scmp.eq.s32.totalorder %s18, 1
      %p94 = por %p92, %p93
      %p95 = scmp.ne.s32.totalorder %s87, %s90
      %p96 = scmp.eq.s32.totalorder %s18, 0
      %p97 = por %p95, %p96
      %p98 = scmp.ne.s32.totalorder %s87, %s90
      %p99 = scmp.eq.s32.totalorder %s23, 1
      %p100 = por %p98, %p99
      %p101 = scmp.ne.s32.totalorder %s90, %s91
      %p102 = scmp.eq.s32.totalorder %s23, 0
      %p103 = por %p101, %p102
      %p104 = scmp.ne.s32.totalorder %s90, %s91
      %p105 = scmp.eq.s32.totalorder %s24, 1
      %p106 = por %p104, %p105
      %p108 = scmp.ne.s32.totalorder %s91, %s107
      %p109 = scmp.eq.s32.totalorder %s24, 0
      %p110 = por %p108, %p109
      %s111 = ssub.s32 %s26, %s33
      %p112 = scmp.eq.s32.totalorder %s111, 0
      %s114 = sadd.s32 %s113, 1
      %s115 = scalar_select %p112, %s113, %s114
      %p118 = pneg %p112
      %p119 = scmp.eq.s32.totalorder %s18, 1
      %p120 = por %p118, %p119
      %p121 = scmp.ne.s32.totalorder %s113, %s116
      %p122 = scmp.eq.s32.totalorder %s18, 0
      %p123 = por %p121, %p122
      %p124 = scmp.ne.s32.totalorder %s113, %s116
      %p125 = scmp.eq.s32.totalorder %s23, 1
      %p126 = por %p124, %p125
      %p127 = scmp.ne.s32.totalorder %s116, %s117
      %p128 = scmp.eq.s32.totalorder %s23, 0
      %p129 = por %p127, %p128
      %p130 = scmp.ne.s32.totalorder %s116, %s117
      %p131 = scmp.eq.s32.totalorder %s24, 1
      %p132 = por %p130, %p131
      %p134 = scmp.ne.s32.totalorder %s117, %s133
      %p135 = scmp.eq.s32.totalorder %s24, 0
      %p136 = por %p134, %p135
      %s137 = ssub.s32 %s26, %s33
      %p138 = scmp.eq.s32.totalorder %s137, 0
      %s140 = sadd.s32 %s139, 1
      %s141 = scalar_select %p138, %s139, %s140
      %p144 = pneg %p138
      %p145 = scmp.eq.s32.totalorder %s18, 1
      %p146 = por %p144, %p145
      %p147 = scmp.ne.s32.totalorder %s139, %s142
      %p148 = scmp.eq.s32.totalorder %s18, 0
      %p149 = por %p147, %p148
      %p150 = scmp.ne.s32.totalorder %s139, %s142
      %p151 = scmp.eq.s32.totalorder %s23, 1
      %p152 = por %p150, %p151
      %p153 = scmp.ne.s32.totalorder %s142, %s143
      %p154 = scmp.eq.s32.totalorder %s23, 0
      %p155 = por %p153, %p154
      %p156 = scmp.ne.s32.totalorder %s142, %s143
      %p157 = scmp.eq.s32.totalorder %s24, 1
      %p158 = por %p156, %p157
      %p160 = scmp.ne.s32.totalorder %s143, %s159
      %p161 = scmp.eq.s32.totalorder %s24, 0
      %p162 = por %p160, %p161
      %s163 = ssub.s32 %s26, %s33
      %p164 = scmp.eq.s32.totalorder %s163, 0
      %s166 = sadd.s32 %s165, 1
      %s167 = scalar_select %p164, %s165, %s166
      %p170 = pneg %p164
      %p171 = scmp.eq.s32.totalorder %s18, 1
      %p172 = por %p170, %p171
      %p173 = scmp.ne.s32.totalorder %s165, %s168
      %p174 = scmp.eq.s32.totalorder %s18, 0
      %p175 = por %p173, %p174
      %p176 = scmp.ne.s32.totalorder %s165, %s168
      %p177 = scmp.eq.s32.totalorder %s23, 1
      %p178 = por %p176, %p177
      %p179 = scmp.ne.s32.totalorder %s168, %s169
      %p180 = scmp.eq.s32.totalorder %s23, 0
      %p181 = por %p179, %p180
      %p182 = scmp.ne.s32.totalorder %s168, %s169
      %p183 = scmp.eq.s32.totalorder %s24, 1
      %p184 = por %p182, %p183
      %p186 = scmp.ne.s32.totalorder %s169, %s185
      %p187 = scmp.eq.s32.totalorder %s24, 0
      %p188 = por %p186, %p187
      %s189 = ssub.s32 %s26, %s33
      %p190 = scmp.eq.s32.totalorder %s189, 0
      %s192 = sadd.s32 %s191, 1
      %s193 = scalar_select %p190, %s191, %s192
      %p196 = pneg %p190
      %p197 = scmp.eq.s32.totalorder %s18, 1
      %p198 = por %p196, %p197
      %p199 = scmp.ne.s32.totalorder %s191, %s194
      %p200 = scmp.eq.s32.totalorder %s18, 0
      %p201 = por %p199, %p200
      %p202 = scmp.ne.s32.totalorder %s191, %s194
      %p203 = scmp.eq.s32.totalorder %s23, 1
      %p204 = por %p202, %p203
      %p205 = scmp.ne.s32.totalorder %s194, %s195
      %p206 = scmp.eq.s32.totalorder %s23, 0
      %p207 = por %p205, %p206
      %p208 = scmp.ne.s32.totalorder %s194, %s195
      %p209 = scmp.eq.s32.totalorder %s24, 1
      %p210 = por %p208, %p209
      %p212 = scmp.ne.s32.totalorder %s195, %s211
      %p213 = scmp.eq.s32.totalorder %s24, 0
      %p214 = por %p212, %p213
      %s215 = ssub.s32 %s26, %s33
      %p216 = scmp.eq.s32.totalorder %s215, 0
      %s218 = sadd.s32 %s217, 1
      %s219 = scalar_select %p216, %s217, %s218
      %p222 = pneg %p216
      %p223 = scmp.eq.s32.totalorder %s18, 1
      %p224 = por %p222, %p223
      %p225 = scmp.ne.s32.totalorder %s217, %s220
      %p226 = scmp.eq.s32.totalorder %s18, 0
      %p227 = por %p225, %p226
      %p228 = scmp.ne.s32.totalorder %s217, %s220
      %p229 = scmp.eq.s32.totalorder %s23, 1
      %p230 = por %p228, %p229
      %p231 = scmp.ne.s32.totalorder %s220, %s221
      %p232 = scmp.eq.s32.totalorder %s23, 0
      %p233 = por %p231, %p232
      %p234 = scmp.ne.s32.totalorder %s220, %s221
      %p235 = scmp.eq.s32.totalorder %s24, 1
      %p236 = por %p234, %p235
      %p238 = scmp.ne.s32.totalorder %s221, %s237
      %p239 = scmp.eq.s32.totalorder %s24, 0
      %p240 = por %p238, %p239
      %s242 = sadd.s32 %s241, 1
      %p245 = scmp.eq.s32.totalorder %s18, 1
      %p246 = scmp.ne.s32.totalorder %s241, %s243
      %p247 = scmp.eq.s32.totalorder %s18, 0
      %p248 = por %p246, %p247
      %p249 = scmp.ne.s32.totalorder %s241, %s243
      %p250 = scmp.eq.s32.totalorder %s23, 1
      %p251 = por %p249, %p250
      %p252 = scmp.ne.s32.totalorder %s243, %s244
      %p253 = scmp.eq.s32.totalorder %s23, 0
      %p254 = por %p252, %p253
      %p255 = scmp.ne.s32.totalorder %s243, %s244
      %p256 = scmp.eq.s32.totalorder %s24, 1
      %p257 = por %p255, %p256
      %p259 = scmp.ne.s32.totalorder %s244, %s258
      %p260 = scmp.eq.s32.totalorder %s24, 0
      %p261 = por %p259, %p260
      %s262 = ssub.s32 %s25, %s37
      %p263 = scmp.eq.s32.totalorder %s262, 0
      %s265 = sadd.s32 %s264, 1
      %s266 = scalar_select %p263, %s264, %s265
      %p269 = pneg %p263
      %p270 = scmp.eq.s32.totalorder %s18, 1
      %p271 = por %p269, %p270
      %p272 = scmp.ne.s32.totalorder %s264, %s267
      %p273 = scmp.eq.s32.totalorder %s18, 0
      %p274 = por %p272, %p273
      %p275 = scmp.ne.s32.totalorder %s264, %s267
      %p276 = scmp.eq.s32.totalorder %s23, 1
      %p277 = por %p275, %p276
      %p278 = scmp.ne.s32.totalorder %s267, %s268
      %p279 = scmp.eq.s32.totalorder %s23, 0
      %p280 = por %p278, %p279
      %p281 = scmp.ne.s32.totalorder %s267, %s268
      %p282 = scmp.eq.s32.totalorder %s24, 1
      %p283 = por %p281, %p282
      %p285 = scmp.ne.s32.totalorder %s268, %s284
      %p286 = scmp.eq.s32.totalorder %s24, 0
      %p287 = por %p285, %p286
      %p288 = scmp.le.s32.totalorder 1, %s18
      %p289 = scmp.lt.s32.totalorder %s18, 3
      %p290 = pnand %p288, %p289
      %p291 = pneg %p290
      // Predicated region
      $region9: #{tpu_custom_call.1} parent=5 // pred_check
        _
      $region10: #{tpu_custom_call.1} parent=5 // pred_check_branch
        %293 = sbr.rel (%p290) target = $region12
      $region11: #{tpu_custom_call.1} parent=5 // pred_region
        %s294 = ssub.s32 %s18, 1
        // Predicated region
        $region13: #{tpu_custom_call.1} parent=11 // pred_check
          %p295 = pneg %p56
        $region14: #{tpu_custom_call.1} parent=11 // pred_check_branch
          %297 = sbr.rel (%p295) target = $region16
        $region15: #{tpu_custom_call.1} parent=11 // pred_region
          %s298 = smul.u32 2, %s27
          %s300 = ssub.s32 256, 256
          %301 = vsyncadd [#allocation4], %s300
          %s302 = smul.addr %s298, 128
          %s303 = scalar_lea.hbm %s0, %s302
          %s304 = sshll.u32 [#allocation3], 4
          %s305 = int_to_ptr.vmem [resolvable:$true] %s304
          %310 = dma.hbm_to_vmem [thread:$0]  %s303, 256, %s305, [#allocation4], 128, 128, 8
        $region16: #{tpu_custom_call.1} parent=11 // pred_fallthru
          _
        // Predicated region
        $region17: #{tpu_custom_call.1} parent=11 // pred_check
          %p311 = pneg %p77
        $region18: #{tpu_custom_call.1} parent=11 // pred_check_branch
          %313 = sbr.rel (%p311) target = $region20
        $region19: #{tpu_custom_call.1} parent=11 // pred_region
          %s315 = ssub.s32 128, 128
          %316 = vsyncadd [#allocation7], %s315
          %s318 = sshll.u32 [#allocation6], 4
          %s319 = int_to_ptr.vmem [resolvable:$true] %s318
          %321 = dma.hbm_to_vmem [thread:$0]  %s1, 128, %s319, [#allocation7]
        $region20: #{tpu_custom_call.1} parent=11 // pred_fallthru
          _
        // Predicated region
        $region21: #{tpu_custom_call.1} parent=11 // pred_check
          %p322 = pneg %p103
        $region22: #{tpu_custom_call.1} parent=11 // pred_check_branch
          %324 = sbr.rel (%p322) target = $region24
        $region23: #{tpu_custom_call.1} parent=11 // pred_region
          %s325 = smul.u32 2, %s27
          %p326 = scmp.lt.s32.totalorder %s325, 1
          %s327 = scalar_select %p326, %s325, 1
          %s328 = scalar_lea.vmem %s2, %s327
          %s329 = smul.u32 2, %s27
        $region24: #{tpu_custom_call.1} parent=11 // pred_fallthru
          _
        // Predicated region
        $region25: #{tpu_custom_call.1} parent=11 // pred_check
          %p330 = pneg %p254
        $region26: #{tpu_custom_call.1} parent=11 // pred_check_branch
          %332 = sbr.rel (%p330) target = $region28
        $region27: #{tpu_custom_call.1} parent=11 // pred_region
          _
        $region28: #{tpu_custom_call.1} parent=11 // pred_fallthru
          _
      $region12: #{tpu_custom_call.1} parent=5 // pred_fallthru
        _
      %p333 = scmp.lt.s32.totalorder %s18, 2
      // Predicated region
      $region29: #{tpu_custom_call.1} parent=5 // pred_check
        %p334 = pneg %p333
      $region30: #{tpu_custom_call.1} parent=5 // pred_check_branch
        %336 = sbr.rel (%p334) target = $region32
      $region31: #{tpu_custom_call.1} parent=5 // pred_region
        // Predicated region
        $region33: #{tpu_custom_call.1} parent=31 // pred_check
          %p337 = pneg %p123
        $region34: #{tpu_custom_call.1} parent=31 // pred_check_branch
          %339 = sbr.rel (%p337) target = $region36
        $region35: #{tpu_custom_call.1} parent=31 // pred_region
          %p340 = scmp.lt.s32.totalorder %s26, 1
          %s341 = scalar_select %p340, %s26, 1
          %s342 = smul.addr %s341, 4
          %s343 = smul.addr %s342, 4
          %s344 = scalar_lea.vmem %s3, %s343
        $region36: #{tpu_custom_call.1} parent=31 // pred_fallthru
          _
        // Predicated region
        $region37: #{tpu_custom_call.1} parent=31 // pred_check
          %p345 = pneg %p149
        $region38: #{tpu_custom_call.1} parent=31 // pred_check_branch
          %347 = sbr.rel (%p345) target = $region40
        $region39: #{tpu_custom_call.1} parent=31 // pred_region
          %p348 = scmp.lt.s32.totalorder %s26, 1
          %s349 = scalar_select %p348, %s26, 1
          %s350 = smul.addr %s349, 4
          %s351 = smul.addr %s350, 4
          %s352 = scalar_lea.vmem %s4, %s351
        $region40: #{tpu_custom_call.1} parent=31 // pred_fallthru
          _
        // Predicated region
        $region41: #{tpu_custom_call.1} parent=31 // pred_check
          %p353 = pneg %p175
        $region42: #{tpu_custom_call.1} parent=31 // pred_check_branch
          %355 = sbr.rel (%p353) target = $region44
        $region43: #{tpu_custom_call.1} parent=31 // pred_region
          %p356 = scmp.lt.s32.totalorder %s26, 1
          %s357 = scalar_select %p356, %s26, 1
          %s358 = smul.addr %s357, 4
          %s359 = smul.addr %s358, 4
          %s360 = scalar_lea.vmem %s5, %s359
        $region44: #{tpu_custom_call.1} parent=31 // pred_fallthru
          _
        // Predicated region
        $region45: #{tpu_custom_call.1} parent=31 // pred_check
          %p361 = pneg %p201
        $region46: #{tpu_custom_call.1} parent=31 // pred_check_branch
          %363 = sbr.rel (%p361) target = $region48
        $region47: #{tpu_custom_call.1} parent=31 // pred_region
          %p364 = scmp.lt.s32.totalorder %s26, 1
          %s365 = scalar_select %p364, %s26, 1
          %s366 = smul.addr %s365, 8
          %s367 = smul.addr %s366, 4
          %s368 = scalar_lea.vmem %s6, %s367
        $region48: #{tpu_custom_call.1} parent=31 // pred_fallthru
          _
        // Predicated region
        $region49: #{tpu_custom_call.1} parent=31 // pred_check
          %p369 = pneg %p227
        $region50: #{tpu_custom_call.1} parent=31 // pred_check_branch
          %371 = sbr.rel (%p369) target = $region52
        $region51: #{tpu_custom_call.1} parent=31 // pred_region
          %p372 = scmp.lt.s32.totalorder %s26, 1
          %s373 = scalar_select %p372, %s26, 1
          %s374 = smul.addr %s373, 8
          %s375 = scalar_lea.vmem %s7, %s374
        $region52: #{tpu_custom_call.1} parent=31 // pred_fallthru
          _
      $region32: #{tpu_custom_call.1} parent=5 // pred_fallthru
        _
      %p376 = scmp.le.s32.totalorder 1, %s18
      %p377 = scmp.lt.s32.totalorder %s18, 3
      %p378 = pnand %p376, %p377
      %p379 = pneg %p378
      // Predicated region
      $region53: #{tpu_custom_call.1} parent=5 // pred_check
        _
      $region54: #{tpu_custom_call.1} parent=5 // pred_check_branch
        %381 = sbr.rel (%p378) target = $region56
      $region55: #{tpu_custom_call.1} parent=5 // pred_region
        %s382 = ssub.s32 %s18, 1
        // Predicated region
        $region57: #{tpu_custom_call.1} parent=55 // pred_check
          %p383 = pneg %p56
        $region58: #{tpu_custom_call.1} parent=55 // pred_check_branch
          %385 = sbr.rel (%p383) target = $region60
        $region59: #{tpu_custom_call.1} parent=55 // pred_region
          %386 = dma.done [#allocation4], 256
        $region60: #{tpu_custom_call.1} parent=55 // pred_fallthru
          _
        // Predicated region
        $region61: #{tpu_custom_call.1} parent=55 // pred_check
          %p387 = pneg %p77
        $region62: #{tpu_custom_call.1} parent=55 // pred_check_branch
          %389 = sbr.rel (%p387) target = $region64
        $region63: #{tpu_custom_call.1} parent=55 // pred_region
          %390 = dma.done [#allocation7], 128
        $region64: #{tpu_custom_call.1} parent=55 // pred_fallthru
          _
        %p391 = pneg %p56
        %p392 = pneg %p53
        %p393 = pneg %p77
        %p394 = pneg %p74
        %s395 = smul.u32 2, %s27
        %p396 = scmp.lt.s32.totalorder %s395, 1
        %s397 = scalar_select %p396, %s395, 1
        %s398 = scalar_lea.vmem %s2, %s397
        %p399 = pneg %p103
        %p400 = pneg %p100
        %p401 = scmp.lt.s32.totalorder %s28, 1
        %s402 = scalar_select %p401, %s28, 1
        %s403 = smul.addr %s402, 4
        %s404 = smul.addr %s403, 4
        %s405 = scalar_lea.vmem %s3, %s404
        %p406 = pneg %p129
        %p407 = pneg %p126
        %p408 = scmp.lt.s32.totalorder %s28, 1
        %s409 = scalar_select %p408, %s28, 1
        %s410 = smul.addr %s409, 4
        %s411 = smul.addr %s410, 4
        %s412 = scalar_lea.vmem %s4, %s411
        %p413 = pneg %p155
        %p414 = pneg %p152
        %p415 = scmp.lt.s32.totalorder %s28, 1
        %s416 = scalar_select %p415, %s28, 1
        %s417 = smul.addr %s416, 4
        %s418 = smul.addr %s417, 4
        %s419 = scalar_lea.vmem %s5, %s418
        %p420 = pneg %p181
        %p421 = pneg %p178
        %p422 = scmp.lt.s32.totalorder %s28, 1
        %s423 = scalar_select %p422, %s28, 1
        %s424 = smul.addr %s423, 8
        %s425 = smul.addr %s424, 4
        %s426 = scalar_lea.vmem %s6, %s425
        %p427 = pneg %p207
        %p428 = pneg %p204
        %p429 = scmp.lt.s32.totalorder %s28, 1
        %s430 = scalar_select %p429, %s28, 1
        %s431 = smul.addr %s430, 8
        %s432 = scalar_lea.vmem %s7, %s431
        %p433 = pneg %p233
        %p434 = pneg %p230
        %p435 = pneg %p254
        %p436 = pneg %p251
        %p437 = pneg %p280
        %p438 = pneg %p277
        %s439 = smul.u32 2, %s27
        %s440 = smul.u32 2, %s27
        %p441 = scmp.lt.s32.totalorder %s440, 1
        %s442 = scalar_select %p441, %s440, 1
        %s443 = scalar_lea.vmem %s2, %s442
        %s444 = smul.u32 2, %s27
        %p445 = scmp.lt.s32.totalorder %s28, 1
        %s446 = scalar_select %p445, %s28, 1
        %s447 = smul.addr %s446, 4
        %s448 = smul.addr %s447, 4
        %s449 = scalar_lea.vmem %s3, %s448
        %p450 = scmp.lt.s32.totalorder %s28, 1
        %s451 = scalar_select %p450, %s28, 1
        %s452 = smul.addr %s451, 4
        %s453 = smul.addr %s452, 4
        %s454 = scalar_lea.vmem %s4, %s453
        %p455 = scmp.lt.s32.totalorder %s28, 1
        %s456 = scalar_select %p455, %s28, 1
        %s457 = smul.addr %s456, 4
        %s458 = smul.addr %s457, 4
        %s459 = scalar_lea.vmem %s5, %s458
        %p460 = scmp.lt.s32.totalorder %s28, 1
        %s461 = scalar_select %p460, %s28, 1
        %s462 = smul.addr %s461, 8
        %s463 = smul.addr %s462, 4
        %s464 = scalar_lea.vmem %s6, %s463
        %p465 = scmp.lt.s32.totalorder %s28, 1
        %s466 = scalar_select %p465, %s28, 1
        %s467 = smul.addr %s466, 8
        %s468 = scalar_lea.vmem %s7, %s467
        %s469 = smul.u32 2, %s27
        %p471 = scmp.eq.s32.totalorder %s28, 0
        // Predicated region
        $region65: #{tpu_custom_call.1} parent=55 // pred_check
          %p472 = pneg %p471
        $region66: #{tpu_custom_call.1} parent=55 // pred_check_branch
          %474 = sbr.rel (%p472) target = $region68
        $region67: #{tpu_custom_call.1} parent=55 // pred_region
          %v475 = vld [vmem:[#allocation3] sm:$0xff]
          %v476 = vld [vmem:[#allocation3 + $0x8] sm:$0xff]
          %v477 = vld [vmem:[#allocation6] sm:$0xff]
          %v478 = vadd.f32 %v475, %v477
          %v479 = vadd.f32 %v476, %v477
          %vm480 = vcmask 261120
          %481 = vst.msk [vmem:[#allocation2] sm:$0xff] %vm480, %v478
          %482 = vst.msk [vmem:[#allocation2 + $0x8] sm:$0xff] %vm480, %v479
        $region68: #{tpu_custom_call.1} parent=55 // pred_fallthru
          _
        %v483 = vld [vmem:[#allocation2] sm:$0xff]
        %v484 = vld [vmem:[#allocation2 + $0x8] sm:$0xff]
        %v485 = vld [vmem:[%s468] sm:$0xff]
        %v486 = vld [vmem:[%s443] sm:$0x1]
        %v487 = vld [vmem:[%s443 + $0x1] sm:$0x1]
        %vm488 = vcmp.gt.f32.partialorder %v486, 0.0
        %vm489 = vcmp.gt.f32.partialorder %v487, 0.0
        %v490 = vsel %vm488, 0.0, -1e+30
        %v491 = vsel %vm489, 0.0, -1e+30
        %vm492 = vcmask 261120
        %v493 = vsel %vm492, %v483, 0.0
        %494 = vadd.xlane.f32.xlu0 %v493
        %v495 = vpop.xlane.xlu0 %494
        %v496 = vsel %vm492, %v484, 0.0
        %497 = vadd.xlane.f32.xlu0 %v496
        %v498 = vpop.xlane.xlu0 %497
        %v499 = vrcp.pop 32.0
        %v500 = vmul.f32 %v495, %v499
        %v501 = vmul.f32 %v498, %v499
        %v502 = vsub.f32 %v483, %v500
        %v503 = vsub.f32 %v484, %v501
        %v504 = vmul.f32 %v502, %v502
        %v505 = vmul.f32 %v503, %v503
        %v506 = vsel %vm492, %v504, 0.0
        %507 = vadd.xlane.f32.xlu0 %v506
        %v508 = vpop.xlane.xlu0 %507
        %v509 = vsel %vm492, %v505, 0.0
        %510 = vadd.xlane.f32.xlu0 %v509
        %v511 = vpop.xlane.xlu0 %510
        %v512 = vmul.f32 %v508, %v499
        %v513 = vmul.f32 %v511, %v499
        %v514 = vadd.f32 %v512, 1e-12
        %v515 = vadd.f32 %v513, 1e-12
        %v516 = vrsqrt.pop %v514
        %v517 = vrsqrt.pop %v515
        %v518 = vmul.f32 %v502, %v516
        %v519 = vmul.f32 %v503, %v517
        %v520 = vlaneseq
        %v521 = vshrl.u32 %v520, 7
        %v522 = vsub.s32 0, %v521
        %v523 = vrot.slane %v485, %v522
        %v524 = vmul.f32 %v518, %v523
        %v525 = vmul.f32 %v519, %v523
        %v526 = vlaneseq
        %v527 = vshrl.u32 %v526, 7
        %v528 = vsub.s32 1, %v527
        %v529 = vrot.slane %v485, %v528
        %v530 = vadd.f32 %v524, %v529
        %v531 = vadd.f32 %v525, %v529
        %v532 = vpack.c.bf16 %v531, %v530
        %v533 = vld [vmem:[%s449] sm:$0xf]
        %v534 = vld [vmem:[%s449 + $0x4] sm:$0xf]
        %v535 = vld [vmem:[%s449 + $0x8] sm:$0xf]
        %v536 = vld [vmem:[%s449 + $0xc] sm:$0xf]
        %v537 = vlaneseq
        %v538 = vshrl.u32 %v537, 7
        %v539 = vsub.s32 2, %v538
        %v540 = vrot.slane %v485, %v539
        %v545 = vunpack.c.l.b16 %v533
        %v546 = vunpack.c.l.b16 %v534
        %v547 = vunpack.c.l.b16 %v535
        %v548 = vunpack.c.l.b16 %v536
        %v549 = vpack.c.b16 %v546, %v545
        %v550 = vpack.c.b16 %v548, %v547
        %v554 = vsel %vm492, %v532, 0
        %556 = vmatprep.subr.bf16.mxu0 0
        %557 = vmatpush1.bf16.msra.mxu0 %v549
        %558 = vmatprep.subr.bf16.mxu0 0
        %559 = vmatpush1.bf16.msra.mxu0 %v550
        %560 = vmatprep.subr.bf16.mxu0 0
        %561 = vmatpush1.bf16.msra.mxu0 0
        %562 = vmatprep.subr.bf16.mxu0 0
        %563 = vmatpush1.bf16.msra.mxu0 0
        %564 = vmatprep.subr.bf16.mxu0 0
        %565 = vmatpush1.bf16.msra.mxu0 0
        %566 = vmatprep.subr.bf16.mxu0 0
        %567 = vmatpush1.bf16.msra.mxu0 0
        %568 = vmatprep.subr.bf16.mxu0 0
        %569 = vmatpush1.bf16.msra.mxu0 0
        %570 = vmatprep.subr.bf16.mxu0 0
        %571 = vmatpush1.bf16.msra.mxu0 0
        %572 = vmatprep.subr.bf16.mxu0 0
        %573 = vmatpush1.bf16.msra.mxu0 0
        %574 = vmatprep.subr.bf16.mxu0 0
        %575 = vmatpush1.bf16.msra.mxu0 0
        %576 = vmatprep.subr.bf16.mxu0 0
        %577 = vmatpush1.bf16.msra.mxu0 0
        %578 = vmatprep.subr.bf16.mxu0 0
        %579 = vmatpush1.bf16.msra.mxu0 0
        %580 = vmatprep.subr.bf16.mxu0 0
        %581 = vmatpush1.bf16.msra.mxu0 0
        %582 = vmatprep.subr.bf16.mxu0 0
        %583 = vmatpush1.bf16.msra.mxu0 0
        %584 = vmatprep.subr.bf16.mxu0 0
        %585 = vmatpush1.bf16.msra.mxu0 0
        %586 = vmatprep.subr.bf16.mxu0 0
        %587 = vmatpush1.bf16.msra.mxu0 0
        %588 = vmatprep.mubr.bf16.mxu0 0
        %589 = vmatmul.mubr.bf16.gmra.mrb[0].mxu0 %v554
        %v590 = vpop.f32.mrb[0].mxu0
        %v591 = vadd.f32 %v540, %v590
        %v592 = vpop.f32.mrb[0].mxu0
        %v593 = vpop.f32.mrb[0].mxu0
        %v594 = vadd.f32 %v540, %v593
        %v595 = vpop.f32.mrb[0].mxu0
        %596 = vdwg.mxu0
        %v597 = vpack.c.bf16 %v594, %v591
        %v599 = vunpack.c.l.b16 %v597
        %v600 = vunpack.c.h.b16 %v597
        %v601 = vpack.c.b16 %v599, %v599
        %v602 = vpack.c.b16 %v600, %v600
        %v605 = vlaneseq
        %v606 = vshrl.u32 %v605, 7
        %v607 = vsub.s32 0, %v606
        %v608 = vrot.slane %v490, %v607
        %v609 = vlaneseq
        %v610 = vshrl.u32 %v609, 7
        %v611 = vsub.s32 0, %v610
        %v612 = vrot.slane %v491, %v611
        %615 = vrot.lane.b32.xlu0 %v601, 96
        %v616 = vpop.permute.xlu0 %615
        %vm617 = vcmask 130048
        %v619 = vsel %vm617, %v601, 0
        %v622 = vsel %vm617, %v616, 0
        %624 = vmatprep.subr.bf16.mxu0 0
        %625 = vmatpush1.bf16.xpose.msra.mxu0 %v622
        %626 = vmatprep.subr.bf16.mxu0 0
        %627 = vmatpush1.bf16.xpose.msra.mxu0 0
        %628 = vmatprep.subr.bf16.mxu0 0
        %629 = vmatpush1.bf16.xpose.msra.mxu0 0
        %630 = vmatprep.subr.bf16.mxu0 0
        %631 = vmatpush1.bf16.xpose.msra.mxu0 0
        %632 = vmatprep.subr.bf16.mxu0 0
        %633 = vmatpush1.bf16.xpose.msra.mxu0 0
        %634 = vmatprep.subr.bf16.mxu0 0
        %635 = vmatpush1.bf16.xpose.msra.mxu0 0
        %636 = vmatprep.subr.bf16.mxu0 0
        %637 = vmatpush1.bf16.xpose.msra.mxu0 0
        %638 = vmatprep.subr.bf16.mxu0 0
        %639 = vmatpush1.bf16.xpose.msra.mxu0 0
        %640 = vmatprep.subr.bf16.mxu0 0
        %641 = vmatpush1.bf16.xpose.msra.mxu0 0
        %642 = vmatprep.subr.bf16.mxu0 0
        %643 = vmatpush1.bf16.xpose.msra.mxu0 0
        %644 = vmatprep.subr.bf16.mxu0 0
        %645 = vmatpush1.bf16.xpose.msra.mxu0 0
        %646 = vmatprep.subr.bf16.mxu0 0
        %647 = vmatpush1.bf16.xpose.msra.mxu0 0
        %648 = vmatprep.subr.bf16.mxu0 0
        %649 = vmatpush1.bf16.xpose.msra.mxu0 0
        %650 = vmatprep.subr.bf16.mxu0 0
        %651 = vmatpush1.bf16.xpose.msra.mxu0 0
        %652 = vmatprep.subr.bf16.mxu0 0
        %653 = vmatpush1.bf16.xpose.msra.mxu0 0
        %654 = vmatprep.subr.bf16.mxu0 0
        %655 = vmatpush1.bf16.xpose.msra.mxu0 0
        %656 = vmatprep.mubr.bf16.mxu0 0
        %657 = vmatmul.mubr.bf16.gmra.mrb[0].mxu0 %v619
        %v658 = vpop.f32.mrb[0].mxu0
        %v659 = vadd.f32 %v608, %v658
        %v660 = vpop.f32.mrb[0].mxu0
        %v661 = vpop.f32.mrb[0].mxu0
        %v662 = vpop.f32.mrb[0].mxu0
        %663 = vdwg.mxu0
        %664 = vrot.lane.b32.xlu0 %v602, 96
        %v665 = vpop.permute.xlu0 %664
        %v667 = vsel %vm617, %v602, 0
        %v670 = vsel %vm617, %v665, 0
        %672 = vmatprep.subr.bf16.mxu0 0
        %673 = vmatpush1.bf16.xpose.msra.mxu0 %v670
        %674 = vmatprep.subr.bf16.mxu0 0
        %675 = vmatpush1.bf16.xpose.msra.mxu0 0
        %676 = vmatprep.subr.bf16.mxu0 0
        %677 = vmatpush1.bf16.xpose.msra.mxu0 0
        %678 = vmatprep.subr.bf16.mxu0 0
        %679 = vmatpush1.bf16.xpose.msra.mxu0 0
        %680 = vmatprep.subr.bf16.mxu0 0
        %681 = vmatpush1.bf16.xpose.msra.mxu0 0
        %682 = vmatprep.subr.bf16.mxu0 0
        %683 = vmatpush1.bf16.xpose.msra.mxu0 0
        %684 = vmatprep.subr.bf16.mxu0 0
        %685 = vmatpush1.bf16.xpose.msra.mxu0 0
        %686 = vmatprep.subr.bf16.mxu0 0
        %687 = vmatpush1.bf16.xpose.msra.mxu0 0
        %688 = vmatprep.subr.bf16.mxu0 0
        %689 = vmatpush1.bf16.xpose.msra.mxu0 0
        %690 = vmatprep.subr.bf16.mxu0 0
        %691 = vmatpush1.bf16.xpose.msra.mxu0 0
        %692 = vmatprep.subr.bf16.mxu0 0
        %693 = vmatpush1.bf16.xpose.msra.mxu0 0
        %694 = vmatprep.subr.bf16.mxu0 0
        %695 = vmatpush1.bf16.xpose.msra.mxu0 0
        %696 = vmatprep.subr.bf16.mxu0 0
        %697 = vmatpush1.bf16.xpose.msra.mxu0 0
        %698 = vmatprep.subr.bf16.mxu0 0
        %699 = vmatpush1.bf16.xpose.msra.mxu0 0
        %700 = vmatprep.subr.bf16.mxu0 0
        %701 = vmatpush1.bf16.xpose.msra.mxu0 0
        %702 = vmatprep.subr.bf16.mxu0 0
        %703 = vmatpush1.bf16.xpose.msra.mxu0 0
        %704 = vmatprep.mubr.bf16.mxu0 0
        %705 = vmatmul.mubr.bf16.gmra.mrb[0].mxu0 %v667
        %v706 = vpop.f32.mrb[0].mxu0
        %v707 = vadd.f32 %v612, %v706
        %v708 = vpop.f32.mrb[0].mxu0
        %v709 = vpop.f32.mrb[0].mxu0
        %v710 = vpop.f32.mrb[0].mxu0
        %711 = vdwg.mxu0
        %vm712 = vcmask 64512
        %v713 = vsel %vm712, %v659, -inf
        %714 = vmax.xlane.f32.xlu0 %v713
        %v715 = vpop.xlane.xlu0 %714
        %v716 = vsel %vm712, %v707, -inf
        %717 = vmax.xlane.f32.xlu0 %v716
        %v718 = vpop.xlane.xlu0 %717
        %v719 = vsub.f32 %v659, %v715
        %v720 = vsub.f32 %v707, %v718
        %v721 = vmul.f32 %v719, 1.442695
        %v722 = vpow.pop %v721
        %v723 = vmul.f32 %v720, 1.442695
        %v724 = vpow.pop %v723
        %v725 = vsel %vm712, %v722, 0.0
        %726 = vadd.xlane.f32.xlu0 %v725
        %v727 = vpop.xlane.xlu0 %726
        %v728 = vsel %vm712, %v724, 0.0
        %729 = vadd.xlane.f32.xlu0 %v728
        %v730 = vpop.xlane.xlu0 %729
        %v731 = vrcp.pop %v727
        %v732 = vrcp.pop %v730
        %v733 = vmul.f32 %v722, %v731
        %v734 = vmul.f32 %v724, %v732
        %v735 = vpack.c.bf16 %v733, %v733
        %v736 = vpack.c.bf16 %v734, %v734
        %737 = vrot.lane.b32.xlu0 %v601, 64
        %v738 = vpop.permute.xlu0 %737
        %v740 = vsel %vm712, %v735, 0
        %vm742 = vcmask 1043456
        %v744 = vsel %vm742, %v738, 0
        %746 = vmatprep.subr.bf16.mxu0 0
        %747 = vmatpush1.bf16.msra.mxu0 %v744
        %748 = vmatprep.subr.bf16.mxu0 0
        %749 = vmatpush1.bf16.msra.mxu0 0
        %750 = vmatprep.subr.bf16.mxu0 0
        %751 = vmatpush1.bf16.msra.mxu0 0
        %752 = vmatprep.subr.bf16.mxu0 0
        %753 = vmatpush1.bf16.msra.mxu0 0
        %754 = vmatprep.subr.bf16.mxu0 0
        %755 = vmatpush1.bf16.msra.mxu0 0
        %756 = vmatprep.subr.bf16.mxu0 0
        %757 = vmatpush1.bf16.msra.mxu0 0
        %758 = vmatprep.subr.bf16.mxu0 0
        %759 = vmatpush1.bf16.msra.mxu0 0
        %760 = vmatprep.subr.bf16.mxu0 0
        %761 = vmatpush1.bf16.msra.mxu0 0
        %762 = vmatprep.subr.bf16.mxu0 0
        %763 = vmatpush1.bf16.msra.mxu0 0
        %764 = vmatprep.subr.bf16.mxu0 0
        %765 = vmatpush1.bf16.msra.mxu0 0
        %766 = vmatprep.subr.bf16.mxu0 0
        %767 = vmatpush1.bf16.msra.mxu0 0
        %768 = vmatprep.subr.bf16.mxu0 0
        %769 = vmatpush1.bf16.msra.mxu0 0
        %770 = vmatprep.subr.bf16.mxu0 0
        %771 = vmatpush1.bf16.msra.mxu0 0
        %772 = vmatprep.subr.bf16.mxu0 0
        %773 = vmatpush1.bf16.msra.mxu0 0
        %774 = vmatprep.subr.bf16.mxu0 0
        %775 = vmatpush1.bf16.msra.mxu0 0
        %776 = vmatprep.subr.bf16.mxu0 0
        %777 = vmatpush1.bf16.msra.mxu0 0
        %778 = vmatprep.mubr.bf16.mxu0 0
        %779 = vmatmul.mubr.bf16.gmra.mrb[0].mxu0 %v740
        %v780 = vpop.f32.mrb[0].mxu0
        %v781 = vadd.f32 0.0, %v780
        %v782 = vpop.f32.mrb[0].mxu0
        %v783 = vpop.f32.mrb[0].mxu0
        %v784 = vpop.f32.mrb[0].mxu0
        %785 = vdwg.mxu0
        %786 = vrot.lane.b32.xlu0 %v602, 64
        %v787 = vpop.permute.xlu0 %786
        %v789 = vsel %vm712, %v736, 0
        %v792 = vsel %vm742, %v787, 0
        %794 = vmatprep.subr.bf16.mxu0 0
        %795 = vmatpush1.bf16.msra.mxu0 %v792
        %796 = vmatprep.subr.bf16.mxu0 0
        %797 = vmatpush1.bf16.msra.mxu0 0
        %798 = vmatprep.subr.bf16.mxu0 0
        %799 = vmatpush1.bf16.msra.mxu0 0
        %800 = vmatprep.subr.bf16.mxu0 0
        %801 = vmatpush1.bf16.msra.mxu0 0
        %802 = vmatprep.subr.bf16.mxu0 0
        %803 = vmatpush1.bf16.msra.mxu0 0
        %804 = vmatprep.subr.bf16.mxu0 0
        %805 = vmatpush1.bf16.msra.mxu0 0
        %806 = vmatprep.subr.bf16.mxu0 0
        %807 = vmatpush1.bf16.msra.mxu0 0
        %808 = vmatprep.subr.bf16.mxu0 0
        %809 = vmatpush1.bf16.msra.mxu0 0
        %810 = vmatprep.subr.bf16.mxu0 0
        %811 = vmatpush1.bf16.msra.mxu0 0
        %812 = vmatprep.subr.bf16.mxu0 0
        %813 = vmatpush1.bf16.msra.mxu0 0
        %814 = vmatprep.subr.bf16.mxu0 0
        %815 = vmatpush1.bf16.msra.mxu0 0
        %816 = vmatprep.subr.bf16.mxu0 0
        %817 = vmatpush1.bf16.msra.mxu0 0
        %818 = vmatprep.subr.bf16.mxu0 0
        %819 = vmatpush1.bf16.msra.mxu0 0
        %820 = vmatprep.subr.bf16.mxu0 0
        %821 = vmatpush1.bf16.msra.mxu0 0
        %822 = vmatprep.subr.bf16.mxu0 0
        %823 = vmatpush1.bf16.msra.mxu0 0
        %824 = vmatprep.subr.bf16.mxu0 0
        %825 = vmatpush1.bf16.msra.mxu0 0
        %826 = vmatprep.mubr.bf16.mxu0 0
        %827 = vmatmul.mubr.bf16.gmra.mrb[0].mxu0 %v789
        %v828 = vpop.f32.mrb[0].mxu0
        %v829 = vadd.f32 0.0, %v828
        %v830 = vpop.f32.mrb[0].mxu0
        %v831 = vpop.f32.mrb[0].mxu0
        %v832 = vpop.f32.mrb[0].mxu0
        %833 = vdwg.mxu0
        %834 = vrot.lane.b32.xlu0 %v601, 112
        %v835 = vpop.permute.xlu0 %834
        %836 = vrot.lane.b32.xlu0 %v601, 80
        %v837 = vpop.permute.xlu0 %836
        %v839 = vsel %vm617, %v835, 0
        %v842 = vsel %vm617, %v837, 0
        %844 = vmatprep.subr.bf16.mxu0 0
        %845 = vmatpush1.bf16.xpose.msra.mxu0 %v842
        %846 = vmatprep.subr.bf16.mxu0 0
        %847 = vmatpush1.bf16.xpose.msra.mxu0 0
        %848 = vmatprep.subr.bf16.mxu0 0
        %849 = vmatpush1.bf16.xpose.msra.mxu0 0
        %850 = vmatprep.subr.bf16.mxu0 0
        %851 = vmatpush1.bf16.xpose.msra.mxu0 0
        %852 = vmatprep.subr.bf16.mxu0 0
        %853 = vmatpush1.bf16.xpose.msra.mxu0 0
        %854 = vmatprep.subr.bf16.mxu0 0
        %855 = vmatpush1.bf16.xpose.msra.mxu0 0
        %856 = vmatprep.subr.bf16.mxu0 0
        %857 = vmatpush1.bf16.xpose.msra.mxu0 0
        %858 = vmatprep.subr.bf16.mxu0 0
        %859 = vmatpush1.bf16.xpose.msra.mxu0 0
        %860 = vmatprep.subr.bf16.mxu0 0
        %861 = vmatpush1.bf16.xpose.msra.mxu0 0
        %862 = vmatprep.subr.bf16.mxu0 0
        %863 = vmatpush1.bf16.xpose.msra.mxu0 0
        %864 = vmatprep.subr.bf16.mxu0 0
        %865 = vmatpush1.bf16.xpose.msra.mxu0 0
        %866 = vmatprep.subr.bf16.mxu0 0
        %867 = vmatpush1.bf16.xpose.msra.mxu0 0
        %868 = vmatprep.subr.bf16.mxu0 0
        %869 = vmatpush1.bf16.xpose.msra.mxu0 0
        %870 = vmatprep.subr.bf16.mxu0 0
        %871 = vmatpush1.bf16.xpose.msra.mxu0 0
        %872 = vmatprep.subr.bf16.mxu0 0
        %873 = vmatpush1.bf16.xpose.msra.mxu0 0
        %874 = vmatprep.subr.bf16.mxu0 0
        %875 = vmatpush1.bf16.xpose.msra.mxu0 0
        %876 = vmatprep.mubr.bf16.mxu0 0
        %877 = vmatmul.mubr.bf16.gmra.mrb[0].mxu0 %v839
        %v878 = vpop.f32.mrb[0].mxu0
        %v879 = vadd.f32 %v608, %v878
        %v880 = vpop.f32.mrb[0].mxu0
        %v881 = vpop.f32.mrb[0].mxu0
        %v882 = vpop.f32.mrb[0].mxu0
        %883 = vdwg.mxu0
        %884 = vrot.lane.b32.xlu0 %v602, 112
        %v885 = vpop.permute.xlu0 %884
        %886 = vrot.lane.b32.xlu0 %v602, 80
        %v887 = vpop.permute.xlu0 %886
        %v889 = vsel %vm617, %v885, 0
        %v892 = vsel %vm617, %v887, 0
        %894 = vmatprep.subr.bf16.mxu0 0
        %895 = vmatpush1.bf16.xpose.msra.mxu0 %v892
        %896 = vmatprep.subr.bf16.mxu0 0
        %897 = vmatpush1.bf16.xpose.msra.mxu0 0
        %898 = vmatprep.subr.bf16.mxu0 0
        %899 = vmatpush1.bf16.xpose.msra.mxu0 0
        %900 = vmatprep.subr.bf16.mxu0 0
        %901 = vmatpush1.bf16.xpose.msra.mxu0 0
        %902 = vmatprep.subr.bf16.mxu0 0
        %903 = vmatpush1.bf16.xpose.msra.mxu0 0
        %904 = vmatprep.subr.bf16.mxu0 0
        %905 = vmatpush1.bf16.xpose.msra.mxu0 0
        %906 = vmatprep.subr.bf16.mxu0 0
        %907 = vmatpush1.bf16.xpose.msra.mxu0 0
        %908 = vmatprep.subr.bf16.mxu0 0
        %909 = vmatpush1.bf16.xpose.msra.mxu0 0
        %910 = vmatprep.subr.bf16.mxu0 0
        %911 = vmatpush1.bf16.xpose.msra.mxu0 0
        %912 = vmatprep.subr.bf16.mxu0 0
        %913 = vmatpush1.bf16.xpose.msra.mxu0 0
        %914 = vmatprep.subr.bf16.mxu0 0
        %915 = vmatpush1.bf16.xpose.msra.mxu0 0
        %916 = vmatprep.subr.bf16.mxu0 0
        %917 = vmatpush1.bf16.xpose.msra.mxu0 0
        %918 = vmatprep.subr.bf16.mxu0 0
        %919 = vmatpush1.bf16.xpose.msra.mxu0 0
        %920 = vmatprep.subr.bf16.mxu0 0
        %921 = vmatpush1.bf16.xpose.msra.mxu0 0
        %922 = vmatprep.subr.bf16.mxu0 0
        %923 = vmatpush1.bf16.xpose.msra.mxu0 0
        %924 = vmatprep.subr.bf16.mxu0 0
        %925 = vmatpush1.bf16.xpose.msra.mxu0 0
        %926 = vmatprep.mubr.bf16.mxu0 0
        %927 = vmatmul.mubr.bf16.gmra.mrb[0].mxu0 %v889
        %v928 = vpop.f32.mrb[0].mxu0
        %v929 = vadd.f32 %v612, %v928
        %v930 = vpop.f32.mrb[0].mxu0
        %v931 = vpop.f32.mrb[0].mxu0
        %v932 = vpop.f32.mrb[0].mxu0
        %933 = vdwg.mxu0
        %v934 = vsel %vm712, %v879, -inf
        %935 = vmax.xlane.f32.xlu0 %v934
        %v936 = vpop.xlane.xlu0 %935
        %v937 = vsel %vm712, %v929, -inf
        %938 = vmax.xlane.f32.xlu0 %v937
        %v939 = vpop.xlane.xlu0 %938
        %v940 = vsub.f32 %v879, %v936
        %v941 = vsub.f32 %v929, %v939
        %v942 = vmul.f32 %v940, 1.442695
        %v943 = vpow.pop %v942
        %v944 = vmul.f32 %v941, 1.442695
        %v945 = vpow.pop %v944
        %v946 = vsel %vm712, %v943, 0.0
        %947 = vadd.xlane.f32.xlu0 %v946
        %v948 = vpop.xlane.xlu0 %947
        %v949 = vsel %vm712, %v945, 0.0
        %950 = vadd.xlane.f32.xlu0 %v949
        %v951 = vpop.xlane.xlu0 %950
        %v952 = vrcp.pop %v948
        %v953 = vrcp.pop %v951
        %v954 = vmul.f32 %v943, %v952
        %v955 = vmul.f32 %v945, %v953
        %v956 = vpack.c.bf16 %v954, %v954
        %v957 = vpack.c.bf16 %v955, %v955
        %958 = vrot.lane.b32.xlu0 %v601, 48
        %v959 = vpop.permute.xlu0 %958
        %v961 = vsel %vm712, %v956, 0
        %v964 = vsel %vm742, %v959, 0
        %966 = vmatprep.subr.bf16.mxu0 0
        %967 = vmatpush1.bf16.msra.mxu0 %v964
        %968 = vmatprep.subr.bf16.mxu0 0
        %969 = vmatpush1.bf16.msra.mxu0 0
        %970 = vmatprep.subr.bf16.mxu0 0
        %971 = vmatpush1.bf16.msra.mxu0 0
        %972 = vmatprep.subr.bf16.mxu0 0
        %973 = vmatpush1.bf16.msra.mxu0 0
        %974 = vmatprep.subr.bf16.mxu0 0
        %975 = vmatpush1.bf16.msra.mxu0 0
        %976 = vmatprep.subr.bf16.mxu0 0
        %977 = vmatpush1.bf16.msra.mxu0 0
        %978 = vmatprep.subr.bf16.mxu0 0
        %979 = vmatpush1.bf16.msra.mxu0 0
        %980 = vmatprep.subr.bf16.mxu0 0
        %981 = vmatpush1.bf16.msra.mxu0 0
        %982 = vmatprep.subr.bf16.mxu0 0
        %983 = vmatpush1.bf16.msra.mxu0 0
        %984 = vmatprep.subr.bf16.mxu0 0
        %985 = vmatpush1.bf16.msra.mxu0 0
        %986 = vmatprep.subr.bf16.mxu0 0
        %987 = vmatpush1.bf16.msra.mxu0 0
        %988 = vmatprep.subr.bf16.mxu0 0
        %989 = vmatpush1.bf16.msra.mxu0 0
        %990 = vmatprep.subr.bf16.mxu0 0
        %991 = vmatpush1.bf16.msra.mxu0 0
        %992 = vmatprep.subr.bf16.mxu0 0
        %993 = vmatpush1.bf16.msra.mxu0 0
        %994 = vmatprep.subr.bf16.mxu0 0
        %995 = vmatpush1.bf16.msra.mxu0 0
        %996 = vmatprep.subr.bf16.mxu0 0
        %997 = vmatpush1.bf16.msra.mxu0 0
        %998 = vmatprep.mubr.bf16.mxu0 0
        %999 = vmatmul.mubr.bf16.gmra.mrb[0].mxu0 %v961
        %v1000 = vpop.f32.mrb[0].mxu0
        %v1001 = vadd.f32 0.0, %v1000
        %v1002 = vpop.f32.mrb[0].mxu0
        %v1003 = vpop.f32.mrb[0].mxu0
        %v1004 = vpop.f32.mrb[0].mxu0
        %1005 = vdwg.mxu0
        %1006 = vrot.lane.b32.xlu0 %v602, 48
        %v1007 = vpop.permute.xlu0 %1006
        %v1009 = vsel %vm712, %v957, 0
        %v1012 = vsel %vm742, %v1007, 0
        %1014 = vmatprep.subr.bf16.mxu0 0
        %1015 = vmatpush1.bf16.msra.mxu0 %v1012
        %1016 = vmatprep.subr.bf16.mxu0 0
        %1017 = vmatpush1.bf16.msra.mxu0 0
        %1018 = vmatprep.subr.bf16.mxu0 0
        %1019 = vmatpush1.bf16.msra.mxu0 0
        %1020 = vmatprep.subr.bf16.mxu0 0
        %1021 = vmatpush1.bf16.msra.mxu0 0
        %1022 = vmatprep.subr.bf16.mxu0 0
        %1023 = vmatpush1.bf16.msra.mxu0 0
        %1024 = vmatprep.subr.bf16.mxu0 0
        %1025 = vmatpush1.bf16.msra.mxu0 0
        %1026 = vmatprep.subr.bf16.mxu0 0
        %1027 = vmatpush1.bf16.msra.mxu0 0
        %1028 = vmatprep.subr.bf16.mxu0 0
        %1029 = vmatpush1.bf16.msra.mxu0 0
        %1030 = vmatprep.subr.bf16.mxu0 0
        %1031 = vmatpush1.bf16.msra.mxu0 0
        %1032 = vmatprep.subr.bf16.mxu0 0
        %1033 = vmatpush1.bf16.msra.mxu0 0
        %1034 = vmatprep.subr.bf16.mxu0 0
        %1035 = vmatpush1.bf16.msra.mxu0 0
        %1036 = vmatprep.subr.bf16.mxu0 0
        %1037 = vmatpush1.bf16.msra.mxu0 0
        %1038 = vmatprep.subr.bf16.mxu0 0
        %1039 = vmatpush1.bf16.msra.mxu0 0
        %1040 = vmatprep.subr.bf16.mxu0 0
        %1041 = vmatpush1.bf16.msra.mxu0 0
        %1042 = vmatprep.subr.bf16.mxu0 0
        %1043 = vmatpush1.bf16.msra.mxu0 0
        %1044 = vmatprep.subr.bf16.mxu0 0
        %1045 = vmatpush1.bf16.msra.mxu0 0
        %1046 = vmatprep.mubr.bf16.mxu0 0
        %1047 = vmatmul.mubr.bf16.gmra.mrb[0].mxu0 %v1009
        %v1048 = vpop.f32.mrb[0].mxu0
        %v1049 = vadd.f32 0.0, %v1048
        %v1050 = vpop.f32.mrb[0].mxu0
        %v1051 = vpop.f32.mrb[0].mxu0
        %v1052 = vpop.f32.mrb[0].mxu0
        %1053 = vdwg.mxu0
        %1056 = vrot.lane.b32.xlu0 %v1001, 16
        %v1057 = vpop.permute.xlu0 %1056
        %1058 = vrot.lane.b32.xlu0 %v1049, 16
        %v1059 = vpop.permute.xlu0 %1058
        %v1062 = vsel %vm617, %v781, %v1057
        %v1063 = vsel %vm617, %v829, %v1059
        %v1064 = vpack.c.bf16 %v1063, %v1062
        %v1065 = vld [vmem:[%s454] sm:$0xf]
        %v1066 = vld [vmem:[%s454 + $0x4] sm:$0xf]
        %v1067 = vld [vmem:[%s454 + $0x8] sm:$0xf]
        %v1068 = vld [vmem:[%s454 + $0xc] sm:$0xf]
        %v1073 = vunpack.c.l.b16 %v1065
        %v1074 = vunpack.c.l.b16 %v1066
        %v1075 = vunpack.c.l.b16 %v1067
        %v1076 = vunpack.c.l.b16 %v1068
        %v1077 = vpack.c.b16 %v1074, %v1073
        %v1078 = vpack.c.b16 %v1076, %v1075
        %v1082 = vsel %vm492, %v1064, 0
        %1084 = vmatprep.subr.bf16.mxu0 0
        %1085 = vmatpush1.bf16.msra.mxu0 %v1077
        %1086 = vmatprep.subr.bf16.mxu0 0
        %1087 = vmatpush1.bf16.msra.mxu0 %v1078
        %1088 = vmatprep.subr.bf16.mxu0 0
        %1089 = vmatpush1.bf16.msra.mxu0 0
        %1090 = vmatprep.subr.bf16.mxu0 0
        %1091 = vmatpush1.bf16.msra.mxu0 0
        %1092 = vmatprep.subr.bf16.mxu0 0
        %1093 = vmatpush1.bf16.msra.mxu0 0
        %1094 = vmatprep.subr.bf16.mxu0 0
        %1095 = vmatpush1.bf16.msra.mxu0 0
        %1096 = vmatprep.subr.bf16.mxu0 0
        %1097 = vmatpush1.bf16.msra.mxu0 0
        %1098 = vmatprep.subr.bf16.mxu0 0
        %1099 = vmatpush1.bf16.msra.mxu0 0
        %1100 = vmatprep.subr.bf16.mxu0 0
        %1101 = vmatpush1.bf16.msra.mxu0 0
        %1102 = vmatprep.subr.bf16.mxu0 0
        %1103 = vmatpush1.bf16.msra.mxu0 0
        %1104 = vmatprep.subr.bf16.mxu0 0
        %1105 = vmatpush1.bf16.msra.mxu0 0
        %1106 = vmatprep.subr.bf16.mxu0 0
        %1107 = vmatpush1.bf16.msra.mxu0 0
        %1108 = vmatprep.subr.bf16.mxu0 0
        %1109 = vmatpush1.bf16.msra.mxu0 0
        %1110 = vmatprep.subr.bf16.mxu0 0
        %1111 = vmatpush1.bf16.msra.mxu0 0
        %1112 = vmatprep.subr.bf16.mxu0 0
        %1113 = vmatpush1.bf16.msra.mxu0 0
        %1114 = vmatprep.subr.bf16.mxu0 0
        %1115 = vmatpush1.bf16.msra.mxu0 0
        %1116 = vmatprep.mubr.bf16.mxu0 0
        %1117 = vmatmul.mubr.bf16.gmra.mrb[0].mxu0 %v1082
        %v1118 = vpop.f32.mrb[0].mxu0
        %v1119 = vadd.f32 0.0, %v1118
        %v1120 = vpop.f32.mrb[0].mxu0
        %v1121 = vpop.f32.mrb[0].mxu0
        %v1122 = vadd.f32 0.0, %v1121
        %v1123 = vpop.f32.mrb[0].mxu0
        %1124 = vdwg.mxu0
        %v1125 = vadd.f32 %v483, %v1119
        %v1126 = vadd.f32 %v484, %v1122
        %v1127 = vlaneseq
        %v1128 = vshrl.u32 %v1127, 7
        %v1129 = vsub.s32 3, %v1128
        %v1130 = vrot.slane %v485, %v1129
        %v1131 = vadd.f32 %v1125, %v1130
        %v1132 = vadd.f32 %v1126, %v1130
        %v1133 = vsel %vm492, %v1131, 0.0
        %1134 = vadd.xlane.f32.xlu0 %v1133
        %v1135 = vpop.xlane.xlu0 %1134
        %v1136 = vsel %vm492, %v1132, 0.0
        %1137 = vadd.xlane.f32.xlu0 %v1136
        %v1138 = vpop.xlane.xlu0 %1137
        %v1139 = vmul.f32 %v1135, %v499
        %v1140 = vmul.f32 %v1138, %v499
        %v1141 = vsub.f32 %v1131, %v1139
        %v1142 = vsub.f32 %v1132, %v1140
        %v1143 = vmul.f32 %v1141, %v1141
        %v1144 = vmul.f32 %v1142, %v1142
        %v1145 = vsel %vm492, %v1143, 0.0
        %1146 = vadd.xlane.f32.xlu0 %v1145
        %v1147 = vpop.xlane.xlu0 %1146
        %v1148 = vsel %vm492, %v1144, 0.0
        %1149 = vadd.xlane.f32.xlu0 %v1148
        %v1150 = vpop.xlane.xlu0 %1149
        %v1151 = vmul.f32 %v1147, %v499
        %v1152 = vmul.f32 %v1150, %v499
        %v1153 = vadd.f32 %v1151, 1e-12
        %v1154 = vadd.f32 %v1152, 1e-12
        %v1155 = vrsqrt.pop %v1153
        %v1156 = vrsqrt.pop %v1154
        %v1157 = vmul.f32 %v1141, %v1155
        %v1158 = vmul.f32 %v1142, %v1156
        %v1159 = vlaneseq
        %v1160 = vshrl.u32 %v1159, 7
        %v1161 = vsub.s32 4, %v1160
        %v1162 = vrot.slane %v485, %v1161
        %v1163 = vmul.f32 %v1157, %v1162
        %v1164 = vmul.f32 %v1158, %v1162
        %v1165 = vlaneseq
        %v1166 = vshrl.u32 %v1165, 7
        %v1167 = vsub.s32 5, %v1166
        %v1168 = vrot.slane %v485, %v1167
        %v1169 = vadd.f32 %v1163, %v1168
        %v1170 = vadd.f32 %v1164, %v1168
        %v1171 = vpack.c.bf16 %v1170, %v1169
        %v1172 = vld [vmem:[%s459] sm:$0xf]
        %v1173 = vld [vmem:[%s459 + $0x4] sm:$0xf]
        %v1174 = vld [vmem:[%s459 + $0x8] sm:$0xf]
        %v1175 = vld [vmem:[%s459 + $0xc] sm:$0xf]
        %v1176 = vlaneseq
        %v1177 = vshrl.u32 %v1176, 7
        %v1178 = vsub.s32 6, %v1177
        %v1179 = vrot.slane %v485, %v1178
        %v1184 = vunpack.c.l.b16 %v1172
        %v1185 = vunpack.c.l.b16 %v1173
        %v1186 = vunpack.c.l.b16 %v1174
        %v1187 = vunpack.c.l.b16 %v1175
        %v1188 = vpack.c.b16 %v1185, %v1184
        %v1189 = vpack.c.b16 %v1187, %v1186
        %v1193 = vsel %vm492, %v1171, 0
        %1195 = vmatprep.subr.bf16.mxu0 0
        %1196 = vmatpush1.bf16.msra.mxu0 %v1188
        %1197 = vmatprep.subr.bf16.mxu0 0
        %1198 = vmatpush1.bf16.msra.mxu0 %v1189
        %1199 = vmatprep.subr.bf16.mxu0 0
        %1200 = vmatpush1.bf16.msra.mxu0 0
        %1201 = vmatprep.subr.bf16.mxu0 0
        %1202 = vmatpush1.bf16.msra.mxu0 0
        %1203 = vmatprep.subr.bf16.mxu0 0
        %1204 = vmatpush1.bf16.msra.mxu0 0
        %1205 = vmatprep.subr.bf16.mxu0 0
        %1206 = vmatpush1.bf16.msra.mxu0 0
        %1207 = vmatprep.subr.bf16.mxu0 0
        %1208 = vmatpush1.bf16.msra.mxu0 0
        %1209 = vmatprep.subr.bf16.mxu0 0
        %1210 = vmatpush1.bf16.msra.mxu0 0
        %1211 = vmatprep.subr.bf16.mxu0 0
        %1212 = vmatpush1.bf16.msra.mxu0 0
        %1213 = vmatprep.subr.bf16.mxu0 0
        %1214 = vmatpush1.bf16.msra.mxu0 0
        %1215 = vmatprep.subr.bf16.mxu0 0
        %1216 = vmatpush1.bf16.msra.mxu0 0
        %1217 = vmatprep.subr.bf16.mxu0 0
        %1218 = vmatpush1.bf16.msra.mxu0 0
        %1219 = vmatprep.subr.bf16.mxu0 0
        %1220 = vmatpush1.bf16.msra.mxu0 0
        %1221 = vmatprep.subr.bf16.mxu0 0
        %1222 = vmatpush1.bf16.msra.mxu0 0
        %1223 = vmatprep.subr.bf16.mxu0 0
        %1224 = vmatpush1.bf16.msra.mxu0 0
        %1225 = vmatprep.subr.bf16.mxu0 0
        %1226 = vmatpush1.bf16.msra.mxu0 0
        %1227 = vmatprep.mubr.bf16.mxu0 0
        %1228 = vmatmul.mubr.bf16.gmra.mrb[0].mxu0 %v1193
        %v1229 = vpop.f32.mrb[0].mxu0
        %v1230 = vadd.f32 %v1179, %v1229
        %v1231 = vpop.f32.mrb[0].mxu0
        %v1232 = vpop.f32.mrb[0].mxu0
        %v1233 = vadd.f32 %v1179, %v1232
        %v1234 = vpop.f32.mrb[0].mxu0
        %1235 = vdwg.mxu0
        %v1236 = vmax.f32 %v1230, 0.0
        %v1237 = vmax.f32 %v1233, 0.0
        %v1238 = vpack.c.bf16 %v1237, %v1236
        %v1239 = vld [vmem:[%s464] sm:$0xf]
        %v1240 = vld [vmem:[%s464 + $0x4] sm:$0xf]
        %v1241 = vld [vmem:[%s464 + $0x8] sm:$0xf]
        %v1242 = vld [vmem:[%s464 + $0xc] sm:$0xf]
        %v1243 = vld [vmem:[%s464 + $0x10] sm:$0xf]
        %v1244 = vld [vmem:[%s464 + $0x14] sm:$0xf]
        %v1245 = vld [vmem:[%s464 + $0x18] sm:$0xf]
        %v1246 = vld [vmem:[%s464 + $0x1c] sm:$0xf]
        %v1247 = vlaneseq
        %v1248 = vshrl.u32 %v1247, 7
        %v1249 = vsub.s32 7, %v1248
        %v1250 = vrot.slane %v485, %v1249
        %v1259 = vunpack.c.l.b16 %v1239
        %v1260 = vunpack.c.l.b16 %v1240
        %v1261 = vunpack.c.l.b16 %v1241
        %v1262 = vunpack.c.l.b16 %v1242
        %v1263 = vunpack.c.l.b16 %v1243
        %v1264 = vunpack.c.l.b16 %v1244
        %v1265 = vunpack.c.l.b16 %v1245
        %v1266 = vunpack.c.l.b16 %v1246
        %v1267 = vpack.c.b16 %v1260, %v1259
        %v1268 = vpack.c.b16 %v1262, %v1261
        %v1269 = vpack.c.b16 %v1264, %v1263
        %v1270 = vpack.c.b16 %v1266, %v1265
        %vm1275 = vcmask 523264
        %v1277 = vsel %vm1275, %v1238, 0
        %1279 = vmatprep.subr.bf16.mxu0 0
        %1280 = vmatpush1.bf16.msra.mxu0 %v1267
        %1281 = vmatprep.subr.bf16.mxu0 0
        %1282 = vmatpush1.bf16.msra.mxu0 %v1268
        %1283 = vmatprep.subr.bf16.mxu0 0
        %1284 = vmatpush1.bf16.msra.mxu0 %v1269
        %1285 = vmatprep.subr.bf16.mxu0 0
        %1286 = vmatpush1.bf16.msra.mxu0 %v1270
        %1287 = vmatprep.subr.bf16.mxu0 0
        %1288 = vmatpush1.bf16.msra.mxu0 0
        %1289 = vmatprep.subr.bf16.mxu0 0
        %1290 = vmatpush1.bf16.msra.mxu0 0
        %1291 = vmatprep.subr.bf16.mxu0 0
        %1292 = vmatpush1.bf16.msra.mxu0 0
        %1293 = vmatprep.subr.bf16.mxu0 0
        %1294 = vmatpush1.bf16.msra.mxu0 0
        %1295 = vmatprep.subr.bf16.mxu0 0
        %1296 = vmatpush1.bf16.msra.mxu0 0
        %1297 = vmatprep.subr.bf16.mxu0 0
        %1298 = vmatpush1.bf16.msra.mxu0 0
        %1299 = vmatprep.subr.bf16.mxu0 0
        %1300 = vmatpush1.bf16.msra.mxu0 0
        %1301 = vmatprep.subr.bf16.mxu0 0
        %1302 = vmatpush1.bf16.msra.mxu0 0
        %1303 = vmatprep.subr.bf16.mxu0 0
        %1304 = vmatpush1.bf16.msra.mxu0 0
        %1305 = vmatprep.subr.bf16.mxu0 0
        %1306 = vmatpush1.bf16.msra.mxu0 0
        %1307 = vmatprep.subr.bf16.mxu0 0
        %1308 = vmatpush1.bf16.msra.mxu0 0
        %1309 = vmatprep.subr.bf16.mxu0 0
        %1310 = vmatpush1.bf16.msra.mxu0 0
        %1311 = vmatprep.mubr.bf16.mxu0 0
        %1312 = vmatmul.mubr.bf16.gmra.mrb[0].mxu0 %v1277
        %v1313 = vpop.f32.mrb[0].mxu0
        %v1314 = vadd.f32 %v1250, %v1313
        %v1315 = vpop.f32.mrb[0].mxu0
        %v1316 = vpop.f32.mrb[0].mxu0
        %v1317 = vadd.f32 %v1250, %v1316
        %v1318 = vpop.f32.mrb[0].mxu0
        %1319 = vdwg.mxu0
        %v1320 = vadd.f32 %v1131, %v1314
        %v1321 = vadd.f32 %v1132, %v1317
        %1322 = vst.msk [vmem:[#allocation2] sm:$0xff] %vm492, %v1320
        %1323 = vst.msk [vmem:[#allocation2 + $0x8] sm:$0xff] %vm492, %v1321
        %p1324 = scmp.eq.s32.totalorder %s28, 1
        // Predicated region
        $region69: #{tpu_custom_call.1} parent=55 // pred_check
          %p1325 = pneg %p1324
        $region70: #{tpu_custom_call.1} parent=55 // pred_check_branch
          %1327 = sbr.rel (%p1325) target = $region72
        $region71: #{tpu_custom_call.1} parent=55 // pred_region
          %v1328 = vld [vmem:[#allocation2] sm:$0xff]
          %v1329 = vld [vmem:[#allocation2 + $0x8] sm:$0xff]
          %v1330 = vld [vmem:[%s8] sm:$0x1]
          %v1331 = vld [vmem:[%s8 + $0x1] sm:$0x1]
          %v1332 = vsel %vm492, %v1328, 0.0
          %1333 = vadd.xlane.f32.xlu0 %v1332
          %v1334 = vpop.xlane.xlu0 %1333
          %v1335 = vsel %vm492, %v1329, 0.0
          %1336 = vadd.xlane.f32.xlu0 %v1335
          %v1337 = vpop.xlane.xlu0 %1336
          %v1338 = vmul.f32 %v1334, %v499
          %v1339 = vmul.f32 %v1337, %v499
          %v1340 = vsub.f32 %v1328, %v1338
          %v1341 = vsub.f32 %v1329, %v1339
          %v1342 = vmul.f32 %v1340, %v1340
          %v1343 = vmul.f32 %v1341, %v1341
          %v1344 = vsel %vm492, %v1342, 0.0
          %1345 = vadd.xlane.f32.xlu0 %v1344
          %v1346 = vpop.xlane.xlu0 %1345
          %v1347 = vsel %vm492, %v1343, 0.0
          %1348 = vadd.xlane.f32.xlu0 %v1347
          %v1349 = vpop.xlane.xlu0 %1348
          %v1350 = vmul.f32 %v1346, %v499
          %v1351 = vmul.f32 %v1349, %v499
          %v1352 = vadd.f32 %v1350, 1e-12
          %v1353 = vadd.f32 %v1351, 1e-12
          %v1354 = vrsqrt.pop %v1352
          %v1355 = vrsqrt.pop %v1353
          %v1356 = vmul.f32 %v1340, %v1354
          %v1357 = vmul.f32 %v1341, %v1355
          %v1358 = vlaneseq
          %v1359 = vshrl.u32 %v1358, 7
          %v1360 = vsub.s32 0, %v1359
          %v1361 = vrot.slane %v1330, %v1360
          %v1362 = vmul.f32 %v1356, %v1361
          %v1363 = vmul.f32 %v1357, %v1361
          %v1364 = vlaneseq
          %v1365 = vshrl.u32 %v1364, 7
          %v1366 = vsub.s32 0, %v1365
          %v1367 = vrot.slane %v1331, %v1366
          %v1368 = vadd.f32 %v1362, %v1367
          %v1369 = vadd.f32 %v1363, %v1367
          %1370 = vst.msk [vmem:[#allocation8] sm:$0xff] %vm492, %v1368
          %1371 = vst.msk [vmem:[#allocation8 + $0x8] sm:$0xff] %vm492, %v1369
        $region72: #{tpu_custom_call.1} parent=55 // pred_fallthru
          _
        // Predicated region
        $region73: #{tpu_custom_call.1} parent=55 // pred_check
          %p1372 = pneg %p277
        $region74: #{tpu_custom_call.1} parent=55 // pred_check_branch
          %1374 = sbr.rel (%p1372) target = $region76
        $region75: #{tpu_custom_call.1} parent=55 // pred_region
          %s1375 = smul.u32 2, %s27
          %s1377 = ssub.s32 256, 256
          %1378 = vsyncadd [#allocation5], %s1377
          %s1379 = smul.addr %s1375, 128
          %s1380 = scalar_lea.hbm %s9, %s1379
          %s1381 = sshll.u32 [#allocation8], 4
          %s1382 = int_to_ptr.vmem [resolvable:$true] %s1381
          %1387 = dma.vmem_to_hbm [thread:$0]  %s1382, 256, %s1380, [#allocation5], 128, 128, 8
        $region76: #{tpu_custom_call.1} parent=55 // pred_fallthru
          _
        // Predicated region
        $region77: #{tpu_custom_call.1} parent=55 // pred_check
          %p1388 = pneg %p277
        $region78: #{tpu_custom_call.1} parent=55 // pred_check_branch
          %1390 = sbr.rel (%p1388) target = $region80
        $region79: #{tpu_custom_call.1} parent=55 // pred_region
          %1391 = dma.done [#allocation5], 256
        $region80: #{tpu_custom_call.1} parent=55 // pred_fallthru
          _
      $region56: #{tpu_custom_call.1} parent=5 // pred_fallthru
        _
      %p1392 = scmp.le.s32.totalorder 2, %s18
      // Predicated region
      $region81: #{tpu_custom_call.1} parent=5 // pred_check
        %p1393 = pneg %p1392
      $region82: #{tpu_custom_call.1} parent=5 // pred_check_branch
        %1395 = sbr.rel (%p1393) target = $region84
      $region83: #{tpu_custom_call.1} parent=5 // pred_region
        %s1396 = ssub.s32 %s18, 2
      $region84: #{tpu_custom_call.1} parent=5 // pred_fallthru
        _
    $region6: #{tpu_custom_call.1} parent=1 // loop_footer
      %s22 = sadd.s32 1, %s18
    $region7: #{tpu_custom_call.1} parent=1 // loop_footer_branch
      %17 = sbr.rel target = $region3
    $region8: #{tpu_custom_call.1} parent=1 // loop_exit
      _
    %1397 = vsyncpa [#allocation4], 1
    %s1398 = scalar_lea.sflag [#allocation4], 1
    %1399 = vsyncpa %s1398, 1
    %1400 = vsyncpa [#allocation7], 1
    %1401 = vsyncpa [#allocation5], 1
    %s1402 = scalar_lea.sflag [#allocation5], 1
    %1403 = vsyncpa %s1402, 1

</llo_original>
